<compile_context>
chip_gen: v7x
topology: tpu7x:2x2x1
jax: 0.10.0
libtpu: 0.0.40
codegen_flags: <defaults>
</compile_context>

<pallas_src>
import math
import functools

import jax
import jax.numpy as jnp
from jax import lax
from jax.experimental import pallas as pl
from jax.experimental.pallas import tpu as pltpu


def _round_up(x, m):
    return (x + m - 1) // m * m


def make_rnn_classifier_kernel(num_layers, seq_len, batch_t, hidden_p, unroll):
    """Stacked-RNN + Linear forward on one padded batch tile."""

    def kernel(*refs):
        # refs layout:
        #   x_ref   (T, Bt, Ip)                               [MXU dtype]
        #   [w_ih_l (in_p, Hp), w_hh_l (Hp, Hp), b_l (1, Hp)] * num_layers
        #   w_fc    (Hp, Op), b_fc (1, Op)
        #   out_ref (Bt, Op)                                  [f32]
        #   buf_ref (T, Bt, Hp) VMEM scratch                  [f32]
        x_ref = refs[0]
        layer_refs = refs[1:1 + 3 * num_layers]
        wfc_ref = refs[1 + 3 * num_layers]
        bfc_ref = refs[2 + 3 * num_layers]
        out_ref = refs[3 + 3 * num_layers]
        buf_ref = refs[4 + 3 * num_layers]

        mxu_dt = wfc_ref.dtype  # bf16 (default) or f32 MXU-input dtype

        h_final = None
        for layer in range(num_layers):  # static & small -> unrolled at trace
            w_ih_ref = layer_refs[3 * layer]
            w_hh_ref = layer_refs[3 * layer + 1]
            b_ref = layer_refs[3 * layer + 2]

            # (1) Hoisted input projection: ONE MXU GEMM over the whole
            #     sequence, bias folded in once.  Layer 0 reads x; later
            #     layers read the previous layer's outputs that its
            #     recurrence left in buf_ref (shared scratch).
            if layer == 0:
                src = x_ref[...]                       # already MXU dtype
            else:
                src = buf_ref[...].astype(mxu_dt)
            in_p = src.shape[-1]
            x_flat = src.reshape(seq_len * batch_t, in_p)
            proj = jnp.dot(x_flat, w_ih_ref[...],
                           preferred_element_type=jnp.float32) + b_ref[...]
            buf_ref[...] = proj.reshape(seq_len, batch_t, hidden_p)

            # (2) Serial recurrence: only h @ W_hh must stay sequential.
            #     W_hh read from VMEM once per layer (hoisted out of step).
            w_hh = w_hh_ref[...]
            is_last_layer = layer == num_layers - 1

            def step(t, h, w_hh=w_hh, is_last_layer=is_last_layer):
                h_new = jnp.tanh(
                    buf_ref[t]
                    + jnp.dot(h.astype(mxu_dt), w_hh,
                              preferred_element_type=jnp.float32))
                if not is_last_layer:
                    # Overwrite the proj row just consumed -> becomes the next
                    # layer's input sequence (single shared buffer).
                    buf_ref[t] = h_new
                return h_new

            h0 = jnp.zeros((batch_t, hidden_p), jnp.float32)
            h_final = lax.fori_loop(0, seq_len, step, h0, unroll=unroll)

        # Final Linear on h_n[-1].
        out_ref[...] = (
            jnp.dot(h_final.astype(mxu_dt), wfc_ref[...],
                    preferred_element_type=jnp.float32)
            + bfc_ref[...])

    return kernel


def init_params(key, input_size, hidden_size, num_layers, output_size):
    """Deterministic init matching PyTorch's nn.RNN / nn.Linear shapes."""
    params = {}
    k_rnn = 1.0 / math.sqrt(hidden_size)
    for l in range(num_layers):
        in_dim = input_size if l == 0 else hidden_size
        key, k1, k2, k3, k4 = jax.random.split(key, 5)
        params[f"w_ih_{l}"] = jax.random.uniform(
            k1, (hidden_size, in_dim), jnp.float32, -k_rnn, k_rnn)
        params[f"w_hh_{l}"] = jax.random.uniform(
            k2, (hidden_size, hidden_size), jnp.float32, -k_rnn, k_rnn)
        params[f"b_ih_{l}"] = jax.random.uniform(
            k3, (hidden_size,), jnp.float32, -k_rnn, k_rnn)
        params[f"b_hh_{l}"] = jax.random.uniform(
            k4, (hidden_size,), jnp.float32, -k_rnn, k_rnn)
    k_fc = 1.0 / math.sqrt(hidden_size)
    key, k1, k2 = jax.random.split(key, 3)
    params["w_fc"] = jax.random.uniform(
        k1, (output_size, hidden_size), jnp.float32, -k_fc, k_fc)
    params["b_fc"] = jax.random.uniform(
        k2, (output_size,), jnp.float32, -k_fc, k_fc)
    return params


@functools.partial(jax.jit, static_argnames=("num_layers", "matmul_dtype"))
def rnn_classifier_forward(x, params, *, num_layers,
                           matmul_dtype=jnp.bfloat16):
    """x: (B, T, I) float32 (batch-first, like nn.RNN) -> logits (B, output)."""
    B, T, I = x.shape
    H = params["w_hh_0"].shape[0]
    O = params["w_fc"].shape[0]

    # Pad to vreg-friendly shapes: sublane (batch) multiple of 8, lanes
    # (I/H/O) multiples of 128.  Batch is tiled at <=128 rows per grid step.
    Bt = min(128, _round_up(B, 8))          # batch tile per grid step
    Bp = _round_up(B, Bt)
    Hp = _round_up(H, 128)
    Ip = _round_up(I, 128)
    Op = _round_up(O, 128)
    num_b_tiles = Bp // Bt

    # Time-major + zero padding (zero pads keep the recurrence exact:
    # tanh(0)=0 in padded hidden lanes; padded batch rows are sliced off).
    x_tm = jnp.transpose(x, (1, 0, 2)).astype(jnp.float32)           # (T,B,I)
    x_p = (jnp.zeros((T, Bp, Ip), jnp.float32).at[:, :B, :I].set(x_tm)
           .astype(matmul_dtype))

    inputs = [x_p]
    in_specs = [pl.BlockSpec((T, Bt, Ip), lambda b: (0, b, 0))]
    for l in range(num_layers):
        in_dim = I if l == 0 else H
        in_p = Ip if l == 0 else Hp
        w_ih = params[f"w_ih_{l}"]                                    # (H, in)
        w_hh = params[f"w_hh_{l}"]                                    # (H, H)
        b = params[f"b_ih_{l}"] + params[f"b_hh_{l}"]                 # (H,)
        inputs.append(jnp.zeros((in_p, Hp), jnp.float32)
                      .at[:in_dim, :H].set(w_ih.T).astype(matmul_dtype))
        inputs.append(jnp.zeros((Hp, Hp), jnp.float32)
                      .at[:H, :H].set(w_hh.T).astype(matmul_dtype))
        inputs.append(jnp.zeros((1, Hp), jnp.float32).at[0, :H].set(b))  # f32
        in_specs.append(pl.BlockSpec((in_p, Hp), lambda b: (0, 0)))
        in_specs.append(pl.BlockSpec((Hp, Hp), lambda b: (0, 0)))
        in_specs.append(pl.BlockSpec((1, Hp), lambda b: (0, 0)))
    inputs.append(jnp.zeros((Hp, Op), jnp.float32)
                  .at[:H, :O].set(params["w_fc"].T).astype(matmul_dtype))
    inputs.append(jnp.zeros((1, Op), jnp.float32).at[0, :O].set(params["b_fc"]))
    in_specs.append(pl.BlockSpec((Hp, Op), lambda b: (0, 0)))
    in_specs.append(pl.BlockSpec((1, Op), lambda b: (0, 0)))

    kernel = make_rnn_classifier_kernel(num_layers, T, Bt, Hp,
                                        unroll=max(1, min(8, T)))

    out_p = pl.pallas_call(
        kernel,
        out_shape=jax.ShapeDtypeStruct((Bp, Op), jnp.float32),
        grid=(num_b_tiles,),
        in_specs=in_specs,
        out_specs=pl.BlockSpec((Bt, Op), lambda b: (b, 0)),
        scratch_shapes=[
            pltpu.VMEM((T, Bt, Hp), jnp.float32),   # shared proj / layer-output
        ],
        compiler_params=pltpu.CompilerParams(
            dimension_semantics=("parallel",)),
    )(*inputs)
    return out_p[:B, :O]


def reference_forward(x, params, num_layers):
    """Pure-JAX f32 reference (mirrors torch nn.RNN + nn.Linear semantics)."""
    B, T, I = x.shape
    H = params["w_hh_0"].shape[0]
    layer_in = x
    h_last = None
    for l in range(num_layers):
        w_ih = params[f"w_ih_{l}"]
        w_hh = params[f"w_hh_{l}"]
        b = params[f"b_ih_{l}"] + params[f"b_hh_{l}"]
        h = jnp.zeros((B, H), jnp.float32)
        outs = []
        for t in range(T):
            h = jnp.tanh(layer_in[:, t, :] @ w_ih.T + h @ w_hh.T + b)
            outs.append(h)
        layer_in = jnp.stack(outs, axis=1)
        h_last = h
    return h_last @ params["w_fc"].T + params["b_fc"]


if __name__ == "__main__":
    # Small shapes implied by the module's forward: (batch, seq, input_size)
    batch, seq_len, input_size = 2, 8, 4
    hidden_size, num_layers, output_size = 32, 2, 2

    key = jax.random.PRNGKey(0)
    key, xk = jax.random.split(key)
    x = jax.random.normal(xk, (batch, seq_len, input_size), jnp.float32)

    params = init_params(key, input_size, hidden_size, num_layers, output_size)
    ref = reference_forward(x, params, num_layers)

    # Exactness check: f32 MXU path matches the f32 reference tightly.
    out_f32 = rnn_classifier_forward(x, params, num_layers=num_layers,
                                     matmul_dtype=jnp.float32)
    out_f32 = jax.block_until_ready(out_f32)
    assert out_f32.shape == (batch, output_size)
    assert jnp.allclose(out_f32, ref, atol=1e-5, rtol=1e-5), (out_f32, ref)

    # Default perf path: bf16 MXU inputs, f32 accumulation / elementwise.
    out = rnn_classifier_forward(x, params, num_layers=num_layers)
    out = jax.block_until_ready(out)
    assert out.shape == (batch, output_size)
    assert jnp.allclose(out, ref, atol=5e-2, rtol=5e-2), (out, ref)

    print("KERNEL_OK")
</pallas_src>

<mosaic_0001>
module attributes {stable_mosaic.version = 11 : i64} {
  func.func @kernel(%arg0: i32, %arg1: memref<8x8x128xf32, #tpu.memory_space<vmem>>, %arg2: memref<128x128xf32, #tpu.memory_space<vmem>>, %arg3: memref<128x128xf32, #tpu.memory_space<vmem>>, %arg4: memref<1x128xf32, #tpu.memory_space<vmem>>, %arg5: memref<128x128xf32, #tpu.memory_space<vmem>>, %arg6: memref<128x128xf32, #tpu.memory_space<vmem>>, %arg7: memref<1x128xf32, #tpu.memory_space<vmem>>, %arg8: memref<128x128xf32, #tpu.memory_space<vmem>>, %arg9: memref<1x128xf32, #tpu.memory_space<vmem>>, %arg10: memref<8x128xf32, #tpu.memory_space<vmem>>, %arg11: memref<8x8x128xf32, #tpu.memory_space<vmem>>) attributes {dimension_semantics = [#tpu.dimension_semantics<parallel>], iteration_bounds = array<i64: 1>, scalar_prefetch = 0 : i64, scratch_operands = 1 : i64, tpu.core_type = #tpu.core_type<tc>, window_params = [{transform_indices = @transform_0, window_bounds = array<i64: 8, 8, 128>}, {pipeline_mode = #tpu.pipeline_mode<synchronous>, transform_indices = @transform_1, window_bounds = array<i64: 128, 128>}, {pipeline_mode = #tpu.pipeline_mode<synchronous>, transform_indices = @transform_2, window_bounds = array<i64: 128, 128>}, {pipeline_mode = #tpu.pipeline_mode<synchronous>, transform_indices = @transform_3, window_bounds = array<i64: 1, 128>}, {pipeline_mode = #tpu.pipeline_mode<synchronous>, transform_indices = @transform_4, window_bounds = array<i64: 128, 128>}, {pipeline_mode = #tpu.pipeline_mode<synchronous>, transform_indices = @transform_5, window_bounds = array<i64: 128, 128>}, {pipeline_mode = #tpu.pipeline_mode<synchronous>, transform_indices = @transform_6, window_bounds = array<i64: 1, 128>}, {pipeline_mode = #tpu.pipeline_mode<synchronous>, transform_indices = @transform_7, window_bounds = array<i64: 128, 128>}, {pipeline_mode = #tpu.pipeline_mode<synchronous>, transform_indices = @transform_8, window_bounds = array<i64: 1, 128>}, {transform_indices = @transform_9, window_bounds = array<i64: 8, 128>}]} {
    %c0 = arith.constant 0 : index
    %c0_0 = arith.constant 0 : index
    %c0_1 = arith.constant 0 : index
    %0 = vector.load %arg1[%c0, %c0_0, %c0_1] : memref<8x8x128xf32, #tpu.memory_space<vmem>>, vector<8x8x128xf32>
    %1 = vector.shape_cast %0 : vector<8x8x128xf32> to vector<64x128xf32>
    %c0_2 = arith.constant 0 : index
    %c0_3 = arith.constant 0 : index
    %2 = vector.load %arg2[%c0_2, %c0_3] : memref<128x128xf32, #tpu.memory_space<vmem>>, vector<128x128xf32>
    %cst = arith.constant dense<0.000000e+00> : vector<64x128xf32>
    %3 = tpu.matmul %1, %2, %cst {dimension_numbers = #tpu.dot_dimension_numbers<[1], [0], [0], [1], [0, 0, 1, 1], [], []>} : vector<64x128xf32>, vector<128x128xf32>, vector<64x128xf32> -> vector<64x128xf32>
    %c0_4 = arith.constant 0 : index
    %c0_5 = arith.constant 0 : index
    %4 = vector.load %arg4[%c0_4, %c0_5] : memref<1x128xf32, #tpu.memory_space<vmem>>, vector<1x128xf32>
    %5 = vector.broadcast %4 : vector<1x128xf32> to vector<64x128xf32>
    %6 = arith.addf %3, %5 : vector<64x128xf32>
    %7 = vector.shape_cast %6 : vector<64x128xf32> to vector<8x8x128xf32>
    %c0_6 = arith.constant 0 : index
    %c0_7 = arith.constant 0 : index
    %c0_8 = arith.constant 0 : index
    %8 = vector.load %arg11[%c0_6, %c0_7, %c0_8] : memref<8x8x128xf32, #tpu.memory_space<vmem>>, vector<8x8x128xf32>
    tpu.vector_store %arg11[%c0_6, %c0_7, %c0_8], %7 {strides = array<i32>} : memref<8x8x128xf32, #tpu.memory_space<vmem>>, vector<8x8x128xf32>,
    %c0_9 = arith.constant 0 : index
    %c0_10 = arith.constant 0 : index
    %9 = vector.load %arg3[%c0_9, %c0_10] : memref<128x128xf32, #tpu.memory_space<vmem>>, vector<128x128xf32>
    %cst_11 = arith.constant 0.000000e+00 : f32
    %10 = vector.broadcast %cst_11 : f32 to vector<8x128xf32>
    %c0_i32 = arith.constant 0 : i32
    %11 = arith.index_cast %c0_i32 : i32 to index
    %c0_12 = arith.constant 0 : index
    %c0_13 = arith.constant 0 : index
    %12 = vector.load %arg11[%11, %c0_12, %c0_13] : memref<8x8x128xf32, #tpu.memory_space<vmem>>, vector<1x8x128xf32>
    %13 = vector.shape_cast %12 : vector<1x8x128xf32> to vector<8x128xf32>
    %cst_14 = arith.constant dense<0.000000e+00> : vector<8x128xf32>
    %14 = tpu.matmul %10, %9, %cst_14 {dimension_numbers = #tpu.dot_dimension_numbers<[1], [0], [0], [1], [0, 0, 1, 1], [], []>} : vector<8x128xf32>, vector<128x128xf32>, vector<8x128xf32> -> vector<8x128xf32>
    %15 = arith.addf %13, %14 : vector<8x128xf32>
    %16 = math.tanh %15 : vector<8x128xf32>
    %17 = arith.index_cast %c0_i32 : i32 to index
    %c0_15 = arith.constant 0 : index
    %c0_16 = arith.constant 0 : index
    %18 = vector.load %arg11[%17, %c0_15, %c0_16] : memref<8x8x128xf32, #tpu.memory_space<vmem>>, vector<1x8x128xf32>
    %19 = vector.shape_cast %18 : vector<1x8x128xf32> to vector<8x128xf32>
    %20 = vector.shape_cast %16 : vector<8x128xf32> to vector<1x8x128xf32>
    tpu.vector_store %arg11[%17, %c0_15, %c0_16], %20 {strides = array<i32>} : memref<8x8x128xf32, #tpu.memory_space<vmem>>, vector<1x8x128xf32>,
    %c1_i32 = arith.constant 1 : i32
    %21 = arith.index_cast %c1_i32 : i32 to index
    %c0_17 = arith.constant 0 : index
    %c0_18 = arith.constant 0 : index
    %22 = vector.load %arg11[%21, %c0_17, %c0_18] : memref<8x8x128xf32, #tpu.memory_space<vmem>>, vector<1x8x128xf32>
    %23 = vector.shape_cast %22 : vector<1x8x128xf32> to vector<8x128xf32>
    %cst_19 = arith.constant dense<0.000000e+00> : vector<8x128xf32>
    %24 = tpu.matmul %16, %9, %cst_19 {dimension_numbers = #tpu.dot_dimension_numbers<[1], [0], [0], [1], [0, 0, 1, 1], [], []>} : vector<8x128xf32>, vector<128x128xf32>, vector<8x128xf32> -> vector<8x128xf32>
    %25 = arith.addf %23, %24 : vector<8x128xf32>
    %26 = math.tanh %25 : vector<8x128xf32>
    %27 = arith.index_cast %c1_i32 : i32 to index
    %c0_20 = arith.constant 0 : index
    %c0_21 = arith.constant 0 : index
    %28 = vector.load %arg11[%27, %c0_20, %c0_21] : memref<8x8x128xf32, #tpu.memory_space<vmem>>, vector<1x8x128xf32>
    %29 = vector.shape_cast %28 : vector<1x8x128xf32> to vector<8x128xf32>
    %30 = vector.shape_cast %26 : vector<8x128xf32> to vector<1x8x128xf32>
    tpu.vector_store %arg11[%27, %c0_20, %c0_21], %30 {strides = array<i32>} : memref<8x8x128xf32, #tpu.memory_space<vmem>>, vector<1x8x128xf32>,
    %c2_i32 = arith.constant 2 : i32
    %31 = arith.index_cast %c2_i32 : i32 to index
    %c0_22 = arith.constant 0 : index
    %c0_23 = arith.constant 0 : index
    %32 = vector.load %arg11[%31, %c0_22, %c0_23] : memref<8x8x128xf32, #tpu.memory_space<vmem>>, vector<1x8x128xf32>
    %33 = vector.shape_cast %32 : vector<1x8x128xf32> to vector<8x128xf32>
    %cst_24 = arith.constant dense<0.000000e+00> : vector<8x128xf32>
    %34 = tpu.matmul %26, %9, %cst_24 {dimension_numbers = #tpu.dot_dimension_numbers<[1], [0], [0], [1], [0, 0, 1, 1], [], []>} : vector<8x128xf32>, vector<128x128xf32>, vector<8x128xf32> -> vector<8x128xf32>
    %35 = arith.addf %33, %34 : vector<8x128xf32>
    %36 = math.tanh %35 : vector<8x128xf32>
    %37 = arith.index_cast %c2_i32 : i32 to index
    %c0_25 = arith.constant 0 : index
    %c0_26 = arith.constant 0 : index
    %38 = vector.load %arg11[%37, %c0_25, %c0_26] : memref<8x8x128xf32, #tpu.memory_space<vmem>>, vector<1x8x128xf32>
    %39 = vector.shape_cast %38 : vector<1x8x128xf32> to vector<8x128xf32>
    %40 = vector.shape_cast %36 : vector<8x128xf32> to vector<1x8x128xf32>
    tpu.vector_store %arg11[%37, %c0_25, %c0_26], %40 {strides = array<i32>} : memref<8x8x128xf32, #tpu.memory_space<vmem>>, vector<1x8x128xf32>,
    %c3_i32 = arith.constant 3 : i32
    %41 = arith.index_cast %c3_i32 : i32 to index
    %c0_27 = arith.constant 0 : index
    %c0_28 = arith.constant 0 : index
    %42 = vector.load %arg11[%41, %c0_27, %c0_28] : memref<8x8x128xf32, #tpu.memory_space<vmem>>, vector<1x8x128xf32>
    %43 = vector.shape_cast %42 : vector<1x8x128xf32> to vector<8x128xf32>
    %cst_29 = arith.constant dense<0.000000e+00> : vector<8x128xf32>
    %44 = tpu.matmul %36, %9, %cst_29 {dimension_numbers = #tpu.dot_dimension_numbers<[1], [0], [0], [1], [0, 0, 1, 1], [], []>} : vector<8x128xf32>, vector<128x128xf32>, vector<8x128xf32> -> vector<8x128xf32>
    %45 = arith.addf %43, %44 : vector<8x128xf32>
    %46 = math.tanh %45 : vector<8x128xf32>
    %47 = arith.index_cast %c3_i32 : i32 to index
    %c0_30 = arith.constant 0 : index
    %c0_31 = arith.constant 0 : index
    %48 = vector.load %arg11[%47, %c0_30, %c0_31] : memref<8x8x128xf32, #tpu.memory_space<vmem>>, vector<1x8x128xf32>
    %49 = vector.shape_cast %48 : vector<1x8x128xf32> to vector<8x128xf32>
    %50 = vector.shape_cast %46 : vector<8x128xf32> to vector<1x8x128xf32>
    tpu.vector_store %arg11[%47, %c0_30, %c0_31], %50 {strides = array<i32>} : memref<8x8x128xf32, #tpu.memory_space<vmem>>, vector<1x8x128xf32>,
    %c4_i32 = arith.constant 4 : i32
    %51 = arith.index_cast %c4_i32 : i32 to index
    %c0_32 = arith.constant 0 : index
    %c0_33 = arith.constant 0 : index
    %52 = vector.load %arg11[%51, %c0_32, %c0_33] : memref<8x8x128xf32, #tpu.memory_space<vmem>>, vector<1x8x128xf32>
    %53 = vector.shape_cast %52 : vector<1x8x128xf32> to vector<8x128xf32>
    %cst_34 = arith.constant dense<0.000000e+00> : vector<8x128xf32>
    %54 = tpu.matmul %46, %9, %cst_34 {dimension_numbers = #tpu.dot_dimension_numbers<[1], [0], [0], [1], [0, 0, 1, 1], [], []>} : vector<8x128xf32>, vector<128x128xf32>, vector<8x128xf32> -> vector<8x128xf32>
    %55 = arith.addf %53, %54 : vector<8x128xf32>
    %56 = math.tanh %55 : vector<8x128xf32>
    %57 = arith.index_cast %c4_i32 : i32 to index
    %c0_35 = arith.constant 0 : index
    %c0_36 = arith.constant 0 : index
    %58 = vector.load %arg11[%57, %c0_35, %c0_36] : memref<8x8x128xf32, #tpu.memory_space<vmem>>, vector<1x8x128xf32>
    %59 = vector.shape_cast %58 : vector<1x8x128xf32> to vector<8x128xf32>
    %60 = vector.shape_cast %56 : vector<8x128xf32> to vector<1x8x128xf32>
    tpu.vector_store %arg11[%57, %c0_35, %c0_36], %60 {strides = array<i32>} : memref<8x8x128xf32, #tpu.memory_space<vmem>>, vector<1x8x128xf32>,
    %c5_i32 = arith.constant 5 : i32
    %61 = arith.index_cast %c5_i32 : i32 to index
    %c0_37 = arith.constant 0 : index
    %c0_38 = arith.constant 0 : index
    %62 = vector.load %arg11[%61, %c0_37, %c0_38] : memref<8x8x128xf32, #tpu.memory_space<vmem>>, vector<1x8x128xf32>
    %63 = vector.shape_cast %62 : vector<1x8x128xf32> to vector<8x128xf32>
    %cst_39 = arith.constant dense<0.000000e+00> : vector<8x128xf32>
    %64 = tpu.matmul %56, %9, %cst_39 {dimension_numbers = #tpu.dot_dimension_numbers<[1], [0], [0], [1], [0, 0, 1, 1], [], []>} : vector<8x128xf32>, vector<128x128xf32>, vector<8x128xf32> -> vector<8x128xf32>
    %65 = arith.addf %63, %64 : vector<8x128xf32>
    %66 = math.tanh %65 : vector<8x128xf32>
    %67 = arith.index_cast %c5_i32 : i32 to index
    %c0_40 = arith.constant 0 : index
    %c0_41 = arith.constant 0 : index
    %68 = vector.load %arg11[%67, %c0_40, %c0_41] : memref<8x8x128xf32, #tpu.memory_space<vmem>>, vector<1x8x128xf32>
    %69 = vector.shape_cast %68 : vector<1x8x128xf32> to vector<8x128xf32>
    %70 = vector.shape_cast %66 : vector<8x128xf32> to vector<1x8x128xf32>
    tpu.vector_store %arg11[%67, %c0_40, %c0_41], %70 {strides = array<i32>} : memref<8x8x128xf32, #tpu.memory_space<vmem>>, vector<1x8x128xf32>,
    %c6_i32 = arith.constant 6 : i32
    %71 = arith.index_cast %c6_i32 : i32 to index
    %c0_42 = arith.constant 0 : index
    %c0_43 = arith.constant 0 : index
    %72 = vector.load %arg11[%71, %c0_42, %c0_43] : memref<8x8x128xf32, #tpu.memory_space<vmem>>, vector<1x8x128xf32>
    %73 = vector.shape_cast %72 : vector<1x8x128xf32> to vector<8x128xf32>
    %cst_44 = arith.constant dense<0.000000e+00> : vector<8x128xf32>
    %74 = tpu.matmul %66, %9, %cst_44 {dimension_numbers = #tpu.dot_dimension_numbers<[1], [0], [0], [1], [0, 0, 1, 1], [], []>} : vector<8x128xf32>, vector<128x128xf32>, vector<8x128xf32> -> vector<8x128xf32>
    %75 = arith.addf %73, %74 : vector<8x128xf32>
    %76 = math.tanh %75 : vector<8x128xf32>
    %77 = arith.index_cast %c6_i32 : i32 to index
    %c0_45 = arith.constant 0 : index
    %c0_46 = arith.constant 0 : index
    %78 = vector.load %arg11[%77, %c0_45, %c0_46] : memref<8x8x128xf32, #tpu.memory_space<vmem>>, vector<1x8x128xf32>
    %79 = vector.shape_cast %78 : vector<1x8x128xf32> to vector<8x128xf32>
    %80 = vector.shape_cast %76 : vector<8x128xf32> to vector<1x8x128xf32>
    tpu.vector_store %arg11[%77, %c0_45, %c0_46], %80 {strides = array<i32>} : memref<8x8x128xf32, #tpu.memory_space<vmem>>, vector<1x8x128xf32>,
    %c7_i32 = arith.constant 7 : i32
    %81 = arith.index_cast %c7_i32 : i32 to index
    %c0_47 = arith.constant 0 : index
    %c0_48 = arith.constant 0 : index
    %82 = vector.load %arg11[%81, %c0_47, %c0_48] : memref<8x8x128xf32, #tpu.memory_space<vmem>>, vector<1x8x128xf32>
    %83 = vector.shape_cast %82 : vector<1x8x128xf32> to vector<8x128xf32>
    %cst_49 = arith.constant dense<0.000000e+00> : vector<8x128xf32>
    %84 = tpu.matmul %76, %9, %cst_49 {dimension_numbers = #tpu.dot_dimension_numbers<[1], [0], [0], [1], [0, 0, 1, 1], [], []>} : vector<8x128xf32>, vector<128x128xf32>, vector<8x128xf32> -> vector<8x128xf32>
    %85 = arith.addf %83, %84 : vector<8x128xf32>
    %86 = math.tanh %85 : vector<8x128xf32>
    %87 = arith.index_cast %c7_i32 : i32 to index
    %c0_50 = arith.constant 0 : index
    %c0_51 = arith.constant 0 : index
    %88 = vector.load %arg11[%87, %c0_50, %c0_51] : memref<8x8x128xf32, #tpu.memory_space<vmem>>, vector<1x8x128xf32>
    %89 = vector.shape_cast %88 : vector<1x8x128xf32> to vector<8x128xf32>
    %90 = vector.shape_cast %86 : vector<8x128xf32> to vector<1x8x128xf32>
    tpu.vector_store %arg11[%87, %c0_50, %c0_51], %90 {strides = array<i32>} : memref<8x8x128xf32, #tpu.memory_space<vmem>>, vector<1x8x128xf32>,
    %c8_i32 = arith.constant 8 : i32
    %c0_52 = arith.constant 0 : index
    %c0_53 = arith.constant 0 : index
    %c0_54 = arith.constant 0 : index
    %91 = vector.load %arg11[%c0_52, %c0_53, %c0_54] : memref<8x8x128xf32, #tpu.memory_space<vmem>>, vector<8x8x128xf32>
    %92 = vector.shape_cast %91 : vector<8x8x128xf32> to vector<64x128xf32>
    %c0_55 = arith.constant 0 : index
    %c0_56 = arith.constant 0 : index
    %93 = vector.load %arg5[%c0_55, %c0_56] : memref<128x128xf32, #tpu.memory_space<vmem>>, vector<128x128xf32>
    %cst_57 = arith.constant dense<0.000000e+00> : vector<64x128xf32>
    %94 = tpu.matmul %92, %93, %cst_57 {dimension_numbers = #tpu.dot_dimension_numbers<[1], [0], [0], [1], [0, 0, 1, 1], [], []>} : vector<64x128xf32>, vector<128x128xf32>, vector<64x128xf32> -> vector<64x128xf32>
    %c0_58 = arith.constant 0 : index
    %c0_59 = arith.constant 0 : index
    %95 = vector.load %arg7[%c0_58, %c0_59] : memref<1x128xf32, #tpu.memory_space<vmem>>, vector<1x128xf32>
    %96 = vector.broadcast %95 : vector<1x128xf32> to vector<64x128xf32>
    %97 = arith.addf %94, %96 : vector<64x128xf32>
    %98 = vector.shape_cast %97 : vector<64x128xf32> to vector<8x8x128xf32>
    %c0_60 = arith.constant 0 : index
    %c0_61 = arith.constant 0 : index
    %c0_62 = arith.constant 0 : index
    %99 = vector.load %arg11[%c0_60, %c0_61, %c0_62] : memref<8x8x128xf32, #tpu.memory_space<vmem>>, vector<8x8x128xf32>
    tpu.vector_store %arg11[%c0_60, %c0_61, %c0_62], %98 {strides = array<i32>} : memref<8x8x128xf32, #tpu.memory_space<vmem>>, vector<8x8x128xf32>,
    %c0_63 = arith.constant 0 : index
    %c0_64 = arith.constant 0 : index
    %100 = vector.load %arg6[%c0_63, %c0_64] : memref<128x128xf32, #tpu.memory_space<vmem>>, vector<128x128xf32>
    %cst_65 = arith.constant 0.000000e+00 : f32
    %101 = vector.broadcast %cst_65 : f32 to vector<8x128xf32>
    %c0_i32_66 = arith.constant 0 : i32
    %102 = arith.index_cast %c0_i32_66 : i32 to index
    %c0_67 = arith.constant 0 : index
    %c0_68 = arith.constant 0 : index
    %103 = vector.load %arg11[%102, %c0_67, %c0_68] : memref<8x8x128xf32, #tpu.memory_space<vmem>>, vector<1x8x128xf32>
    %104 = vector.shape_cast %103 : vector<1x8x128xf32> to vector<8x128xf32>
    %cst_69 = arith.constant dense<0.000000e+00> : vector<8x128xf32>
    %105 = tpu.matmul %101, %100, %cst_69 {dimension_numbers = #tpu.dot_dimension_numbers<[1], [0], [0], [1], [0, 0, 1, 1], [], []>} : vector<8x128xf32>, vector<128x128xf32>, vector<8x128xf32> -> vector<8x128xf32>
    %106 = arith.addf %104, %105 : vector<8x128xf32>
    %107 = math.tanh %106 : vector<8x128xf32>
    %c1_i32_70 = arith.constant 1 : i32
    %108 = arith.index_cast %c1_i32_70 : i32 to index
    %c0_71 = arith.constant 0 : index
    %c0_72 = arith.constant 0 : index
    %109 = vector.load %arg11[%108, %c0_71, %c0_72] : memref<8x8x128xf32, #tpu.memory_space<vmem>>, vector<1x8x128xf32>
    %110 = vector.shape_cast %109 : vector<1x8x128xf32> to vector<8x128xf32>
    %cst_73 = arith.constant dense<0.000000e+00> : vector<8x128xf32>
    %111 = tpu.matmul %107, %100, %cst_73 {dimension_numbers = #tpu.dot_dimension_numbers<[1], [0], [0], [1], [0, 0, 1, 1], [], []>} : vector<8x128xf32>, vector<128x128xf32>, vector<8x128xf32> -> vector<8x128xf32>
    %112 = arith.addf %110, %111 : vector<8x128xf32>
    %113 = math.tanh %112 : vector<8x128xf32>
    %c2_i32_74 = arith.constant 2 : i32
    %114 = arith.index_cast %c2_i32_74 : i32 to index
    %c0_75 = arith.constant 0 : index
    %c0_76 = arith.constant 0 : index
    %115 = vector.load %arg11[%114, %c0_75, %c0_76] : memref<8x8x128xf32, #tpu.memory_space<vmem>>, vector<1x8x128xf32>
    %116 = vector.shape_cast %115 : vector<1x8x128xf32> to vector<8x128xf32>
    %cst_77 = arith.constant dense<0.000000e+00> : vector<8x128xf32>
    %117 = tpu.matmul %113, %100, %cst_77 {dimension_numbers = #tpu.dot_dimension_numbers<[1], [0], [0], [1], [0, 0, 1, 1], [], []>} : vector<8x128xf32>, vector<128x128xf32>, vector<8x128xf32> -> vector<8x128xf32>
    %118 = arith.addf %116, %117 : vector<8x128xf32>
    %119 = math.tanh %118 : vector<8x128xf32>
    %c3_i32_78 = arith.constant 3 : i32
    %120 = arith.index_cast %c3_i32_78 : i32 to index
    %c0_79 = arith.constant 0 : index
    %c0_80 = arith.constant 0 : index
    %121 = vector.load %arg11[%120, %c0_79, %c0_80] : memref<8x8x128xf32, #tpu.memory_space<vmem>>, vector<1x8x128xf32>
    %122 = vector.shape_cast %121 : vector<1x8x128xf32> to vector<8x128xf32>
    %cst_81 = arith.constant dense<0.000000e+00> : vector<8x128xf32>
    %123 = tpu.matmul %119, %100, %cst_81 {dimension_numbers = #tpu.dot_dimension_numbers<[1], [0], [0], [1], [0, 0, 1, 1], [], []>} : vector<8x128xf32>, vector<128x128xf32>, vector<8x128xf32> -> vector<8x128xf32>
    %124 = arith.addf %122, %123 : vector<8x128xf32>
    %125 = math.tanh %124 : vector<8x128xf32>
    %c4_i32_82 = arith.constant 4 : i32
    %126 = arith.index_cast %c4_i32_82 : i32 to index
    %c0_83 = arith.constant 0 : index
    %c0_84 = arith.constant 0 : index
    %127 = vector.load %arg11[%126, %c0_83, %c0_84] : memref<8x8x128xf32, #tpu.memory_space<vmem>>, vector<1x8x128xf32>
    %128 = vector.shape_cast %127 : vector<1x8x128xf32> to vector<8x128xf32>
    %cst_85 = arith.constant dense<0.000000e+00> : vector<8x128xf32>
    %129 = tpu.matmul %125, %100, %cst_85 {dimension_numbers = #tpu.dot_dimension_numbers<[1], [0], [0], [1], [0, 0, 1, 1], [], []>} : vector<8x128xf32>, vector<128x128xf32>, vector<8x128xf32> -> vector<8x128xf32>
    %130 = arith.addf %128, %129 : vector<8x128xf32>
    %131 = math.tanh %130 : vector<8x128xf32>
    %c5_i32_86 = arith.constant 5 : i32
    %132 = arith.index_cast %c5_i32_86 : i32 to index
    %c0_87 = arith.constant 0 : index
    %c0_88 = arith.constant 0 : index
    %133 = vector.load %arg11[%132, %c0_87, %c0_88] : memref<8x8x128xf32, #tpu.memory_space<vmem>>, vector<1x8x128xf32>
    %134 = vector.shape_cast %133 : vector<1x8x128xf32> to vector<8x128xf32>
    %cst_89 = arith.constant dense<0.000000e+00> : vector<8x128xf32>
    %135 = tpu.matmul %131, %100, %cst_89 {dimension_numbers = #tpu.dot_dimension_numbers<[1], [0], [0], [1], [0, 0, 1, 1], [], []>} : vector<8x128xf32>, vector<128x128xf32>, vector<8x128xf32> -> vector<8x128xf32>
    %136 = arith.addf %134, %135 : vector<8x128xf32>
    %137 = math.tanh %136 : vector<8x128xf32>
    %c6_i32_90 = arith.constant 6 : i32
    %138 = arith.index_cast %c6_i32_90 : i32 to index
    %c0_91 = arith.constant 0 : index
    %c0_92 = arith.constant 0 : index
    %139 = vector.load %arg11[%138, %c0_91, %c0_92] : memref<8x8x128xf32, #tpu.memory_space<vmem>>, vector<1x8x128xf32>
    %140 = vector.shape_cast %139 : vector<1x8x128xf32> to vector<8x128xf32>
    %cst_93 = arith.constant dense<0.000000e+00> : vector<8x128xf32>
    %141 = tpu.matmul %137, %100, %cst_93 {dimension_numbers = #tpu.dot_dimension_numbers<[1], [0], [0], [1], [0, 0, 1, 1], [], []>} : vector<8x128xf32>, vector<128x128xf32>, vector<8x128xf32> -> vector<8x128xf32>
    %142 = arith.addf %140, %141 : vector<8x128xf32>
    %143 = math.tanh %142 : vector<8x128xf32>
    %c7_i32_94 = arith.constant 7 : i32
    %144 = arith.index_cast %c7_i32_94 : i32 to index
    %c0_95 = arith.constant 0 : index
    %c0_96 = arith.constant 0 : index
    %145 = vector.load %arg11[%144, %c0_95, %c0_96] : memref<8x8x128xf32, #tpu.memory_space<vmem>>, vector<1x8x128xf32>
    %146 = vector.shape_cast %145 : vector<1x8x128xf32> to vector<8x128xf32>
    %cst_97 = arith.constant dense<0.000000e+00> : vector<8x128xf32>
    %147 = tpu.matmul %143, %100, %cst_97 {dimension_numbers = #tpu.dot_dimension_numbers<[1], [0], [0], [1], [0, 0, 1, 1], [], []>} : vector<8x128xf32>, vector<128x128xf32>, vector<8x128xf32> -> vector<8x128xf32>
    %148 = arith.addf %146, %147 : vector<8x128xf32>
    %149 = math.tanh %148 : vector<8x128xf32>
    %c8_i32_98 = arith.constant 8 : i32
    %c0_99 = arith.constant 0 : index
    %c0_100 = arith.constant 0 : index
    %150 = vector.load %arg8[%c0_99, %c0_100] : memref<128x128xf32, #tpu.memory_space<vmem>>, vector<128x128xf32>
    %cst_101 = arith.constant dense<0.000000e+00> : vector<8x128xf32>
    %151 = tpu.matmul %149, %150, %cst_101 {dimension_numbers = #tpu.dot_dimension_numbers<[1], [0], [0], [1], [0, 0, 1, 1], [], []>} : vector<8x128xf32>, vector<128x128xf32>, vector<8x128xf32> -> vector<8x128xf32>
    %c0_102 = arith.constant 0 : index
    %c0_103 = arith.constant 0 : index
    %152 = vector.load %arg9[%c0_102, %c0_103] : memref<1x128xf32, #tpu.memory_space<vmem>>, vector<1x128xf32>
    %153 = vector.broadcast %152 : vector<1x128xf32> to vector<8x128xf32>
    %154 = arith.addf %151, %153 : vector<8x128xf32>
    %c0_104 = arith.constant 0 : index
    %c0_105 = arith.constant 0 : index
    %155 = vector.load %arg10[%c0_104, %c0_105] : memref<8x128xf32, #tpu.memory_space<vmem>>, vector<8x128xf32>
    tpu.vector_store %arg10[%c0_104, %c0_105], %154 {strides = array<i32>} : memref<8x128xf32, #tpu.memory_space<vmem>>, vector<8x128xf32>,
    return
  }
  func.func @transform_0(%arg0: i32) -> (i32, i32, i32) {
    %c0_i32 = arith.constant 0 : i32
    %c0_i32_0 = arith.constant 0 : i32
    %c0_i32_1 = arith.constant 0 : i32
    return %c0_i32, %arg0, %c0_i32_0 : i32, i32, i32
  }
  func.func @transform_1(%arg0: i32) -> (i32, i32) {
    %c0_i32 = arith.constant 0 : i32
    %c0_i32_0 = arith.constant 0 : i32
    %c0_i32_1 = arith.constant 0 : i32
    return %c0_i32, %c0_i32_0 : i32, i32
  }
  func.func @transform_2(%arg0: i32) -> (i32, i32) {
    %c0_i32 = arith.constant 0 : i32
    %c0_i32_0 = arith.constant 0 : i32
    %c0_i32_1 = arith.constant 0 : i32
    return %c0_i32, %c0_i32_0 : i32, i32
  }
  func.func @transform_3(%arg0: i32) -> (i32, i32) {
    %c0_i32 = arith.constant 0 : i32
    %c0_i32_0 = arith.constant 0 : i32
    %c0_i32_1 = arith.constant 0 : i32
    return %c0_i32, %c0_i32_0 : i32, i32
  }
  func.func @transform_4(%arg0: i32) -> (i32, i32) {
    %c0_i32 = arith.constant 0 : i32
    %c0_i32_0 = arith.constant 0 : i32
    %c0_i32_1 = arith.constant 0 : i32
    return %c0_i32, %c0_i32_0 : i32, i32
  }
  func.func @transform_5(%arg0: i32) -> (i32, i32) {
    %c0_i32 = arith.constant 0 : i32
    %c0_i32_0 = arith.constant 0 : i32
    %c0_i32_1 = arith.constant 0 : i32
    return %c0_i32, %c0_i32_0 : i32, i32
  }
  func.func @transform_6(%arg0: i32) -> (i32, i32) {
    %c0_i32 = arith.constant 0 : i32
    %c0_i32_0 = arith.constant 0 : i32
    %c0_i32_1 = arith.constant 0 : i32
    return %c0_i32, %c0_i32_0 : i32, i32
  }
  func.func @transform_7(%arg0: i32) -> (i32, i32) {
    %c0_i32 = arith.constant 0 : i32
    %c0_i32_0 = arith.constant 0 : i32
    %c0_i32_1 = arith.constant 0 : i32
    return %c0_i32, %c0_i32_0 : i32, i32
  }
  func.func @transform_8(%arg0: i32) -> (i32, i32) {
    %c0_i32 = arith.constant 0 : i32
    %c0_i32_0 = arith.constant 0 : i32
    %c0_i32_1 = arith.constant 0 : i32
    return %c0_i32, %c0_i32_0 : i32, i32
  }
  func.func @transform_9(%arg0: i32) -> (i32, i32) {
    %c0_i32 = arith.constant 0 : i32
    %c0_i32_0 = arith.constant 0 : i32
    return %arg0, %c0_i32 : i32, i32
  }
}

</mosaic_0001>

<llo_original>
// kernel: rnn_classifier_forward.1
$region0: #{rnn_classifier_forward.1}
  #allocation0 [shape = 'u32[]', space=smem, size = 0x4, offset = 0x4, fixed_abs, tag = 'smem constant byte address 0x4 - core index']
  #allocation1 [shape = 'u32[144,128]{1,0:T(1,128)}', space=vmem, size = 0x12000, scoped, tag = 'internal scratch']
  #allocation2 [shape = 'f32[8,8,128]{2,1,0:T(8,128)}', space=vmem, size = 0x8000, scoped, tag = 'scratch operand']
  %s0 = inlined_call_operand.vmem [shape: f32[8,8,128], index: 0, kind: input, shape index: {}]
  %s1 = inlined_call_operand.vmem [shape: f32[128,128], index: 1, kind: input, shape index: {}]
  %s2 = inlined_call_operand.vmem [shape: f32[128,128], index: 2, kind: input, shape index: {}]
  %s3 = inlined_call_operand.vmem [shape: f32[1,128], index: 3, kind: input, shape index: {}]
  %s4 = inlined_call_operand.vmem [shape: f32[128,128], index: 4, kind: input, shape index: {}]
  %s5 = inlined_call_operand.vmem [shape: f32[128,128], index: 5, kind: input, shape index: {}]
  %s6 = inlined_call_operand.vmem [shape: f32[1,128], index: 6, kind: input, shape index: {}]
  %s7 = inlined_call_operand.vmem [shape: f32[128,128], index: 7, kind: input, shape index: {}]
  %s8 = inlined_call_operand.vmem [shape: f32[1,128], index: 8, kind: input, shape index: {}]
  %s9 = inlined_call_operand.vmem [shape: f32[8,128], index: 9, kind: output, shape index: {}]
  %s10 = sld [smem:[#allocation0]]
  $region46: #{rnn_classifier_forward.1} parent=0
    _
  %s12 = ssub.s32 1, %s10
  %s13 = scalar_select 0, %s12, %s10
  // Predicated region
  $region2: #{rnn_classifier_forward.1} parent=0 // pred_check
    _
  $region3: #{rnn_classifier_forward.1} parent=0 // pred_check_branch
    %15 = sbr.rel (0) target = $region5
  $region4: #{rnn_classifier_forward.1} parent=0 // pred_region
    _
  $region5: #{rnn_classifier_forward.1} parent=0 // pred_fallthru
    _
  // Predicated region
  $region6: #{rnn_classifier_forward.1} parent=0 // pred_check
    _
  $region7: #{rnn_classifier_forward.1} parent=0 // pred_check_branch
    %17 = sbr.rel (0) target = $region9
  $region8: #{rnn_classifier_forward.1} parent=0 // pred_region
    _
  $region9: #{rnn_classifier_forward.1} parent=0 // pred_fallthru
    _
  // Predicated region
  $region10: #{rnn_classifier_forward.1} parent=0 // pred_check
    _
  $region11: #{rnn_classifier_forward.1} parent=0 // pred_check_branch
    %19 = sbr.rel (0) target = $region13
  $region12: #{rnn_classifier_forward.1} parent=0 // pred_region
    _
  $region13: #{rnn_classifier_forward.1} parent=0 // pred_fallthru
    _
  // Predicated region
  $region14: #{rnn_classifier_forward.1} parent=0 // pred_check
    _
  $region15: #{rnn_classifier_forward.1} parent=0 // pred_check_branch
    %21 = sbr.rel (0) target = $region17
  $region16: #{rnn_classifier_forward.1} parent=0 // pred_region
    _
  $region17: #{rnn_classifier_forward.1} parent=0 // pred_fallthru
    _
  // Predicated region
  $region18: #{rnn_classifier_forward.1} parent=0 // pred_check
    _
  $region19: #{rnn_classifier_forward.1} parent=0 // pred_check_branch
    %23 = sbr.rel (0) target = $region21
  $region20: #{rnn_classifier_forward.1} parent=0 // pred_region
    _
  $region21: #{rnn_classifier_forward.1} parent=0 // pred_fallthru
    _
  // Predicated region
  $region22: #{rnn_classifier_forward.1} parent=0 // pred_check
    _
  $region23: #{rnn_classifier_forward.1} parent=0 // pred_check_branch
    %25 = sbr.rel (0) target = $region25
  $region24: #{rnn_classifier_forward.1} parent=0 // pred_region
    _
  $region25: #{rnn_classifier_forward.1} parent=0 // pred_fallthru
    _
  // Predicated region
  $region26: #{rnn_classifier_forward.1} parent=0 // pred_check
    _
  $region27: #{rnn_classifier_forward.1} parent=0 // pred_check_branch
    %27 = sbr.rel (0) target = $region29
  $region28: #{rnn_classifier_forward.1} parent=0 // pred_region
    _
  $region29: #{rnn_classifier_forward.1} parent=0 // pred_fallthru
    _
  // Predicated region
  $region30: #{rnn_classifier_forward.1} parent=0 // pred_check
    _
  $region31: #{rnn_classifier_forward.1} parent=0 // pred_check_branch
    %29 = sbr.rel (0) target = $region33
  $region32: #{rnn_classifier_forward.1} parent=0 // pred_region
    _
  $region33: #{rnn_classifier_forward.1} parent=0 // pred_fallthru
    _
  // Predicated region
  $region34: #{rnn_classifier_forward.1} parent=0 // pred_check
    _
  $region35: #{rnn_classifier_forward.1} parent=0 // pred_check_branch
    %31 = sbr.rel (0) target = $region37
  $region36: #{rnn_classifier_forward.1} parent=0 // pred_region
    _
  $region37: #{rnn_classifier_forward.1} parent=0 // pred_fallthru
    _
  %v32 = vld [vmem:[%s0] sm:$0xff]
  %v33 = vld [vmem:[%s0 + $0x8] sm:$0xff]
  %v34 = vld [vmem:[%s0 + $0x10] sm:$0xff]
  %v35 = vld [vmem:[%s0 + $0x18] sm:$0xff]
  %v36 = vld [vmem:[%s0 + $0x20] sm:$0xff]
  %v37 = vld [vmem:[%s0 + $0x28] sm:$0xff]
  %v38 = vld [vmem:[%s0 + $0x30] sm:$0xff]
  %v39 = vld [vmem:[%s0 + $0x38] sm:$0xff]
  %v40 = vld [vmem:[%s1] sm:$0xff]
  %v41 = vld [vmem:[%s1 + $0x8] sm:$0xff]
  %v42 = vld [vmem:[%s1 + $0x10] sm:$0xff]
  %v43 = vld [vmem:[%s1 + $0x18] sm:$0xff]
  %v44 = vld [vmem:[%s1 + $0x20] sm:$0xff]
  %v45 = vld [vmem:[%s1 + $0x28] sm:$0xff]
  %v46 = vld [vmem:[%s1 + $0x30] sm:$0xff]
  %v47 = vld [vmem:[%s1 + $0x38] sm:$0xff]
  %v48 = vld [vmem:[%s1 + $0x40] sm:$0xff]
  %v49 = vld [vmem:[%s1 + $0x48] sm:$0xff]
  %v50 = vld [vmem:[%s1 + $0x50] sm:$0xff]
  %v51 = vld [vmem:[%s1 + $0x58] sm:$0xff]
  %v52 = vld [vmem:[%s1 + $0x60] sm:$0xff]
  %v53 = vld [vmem:[%s1 + $0x68] sm:$0xff]
  %v54 = vld [vmem:[%s1 + $0x70] sm:$0xff]
  %v55 = vld [vmem:[%s1 + $0x78] sm:$0xff]
  %v56 = vld [vmem:[%s3] sm:$0x1]
  %v58 = vlaneseq
  %v59 = vshrl.u32 %v58, 7
  %v60 = vsub.s32 0, %v59
  %v61 = vrot.slane %v56, %v60
  %63 = vmatprep.subr.mxu0 0.0
  %64 = vmatpush1.msra.mxu0 %v40
  %65 = vmatprep.subr.mxu0 0.0
  %66 = vmatpush1.msra.mxu0 %v41
  %67 = vmatprep.subr.mxu0 0.0
  %68 = vmatpush1.msra.mxu0 %v42
  %69 = vmatprep.subr.mxu0 0.0
  %70 = vmatpush1.msra.mxu0 %v43
  %71 = vmatprep.subr.mxu0 0.0
  %72 = vmatpush1.msra.mxu0 %v44
  %73 = vmatprep.subr.mxu0 0.0
  %74 = vmatpush1.msra.mxu0 %v45
  %75 = vmatprep.subr.mxu0 0.0
  %76 = vmatpush1.msra.mxu0 %v46
  %77 = vmatprep.subr.mxu0 0.0
  %78 = vmatpush1.msra.mxu0 %v47
  %79 = vmatprep.subr.mxu0 0.0
  %80 = vmatpush1.msra.mxu0 %v48
  %81 = vmatprep.subr.mxu0 0.0
  %82 = vmatpush1.msra.mxu0 %v49
  %83 = vmatprep.subr.mxu0 0.0
  %84 = vmatpush1.msra.mxu0 %v50
  %85 = vmatprep.subr.mxu0 0.0
  %86 = vmatpush1.msra.mxu0 %v51
  %87 = vmatprep.subr.mxu0 0.0
  %88 = vmatpush1.msra.mxu0 %v52
  %89 = vmatprep.subr.mxu0 0.0
  %90 = vmatpush1.msra.mxu0 %v53
  %91 = vmatprep.subr.mxu0 0.0
  %92 = vmatpush1.msra.mxu0 %v54
  %93 = vmatprep.subr.mxu0 0.0
  %94 = vmatpush1.msra.mxu0 %v55
  %95 = vmatprep.subr.mxu0 0.0
  %96 = vmatpush1.msra.mxu0 0.0
  %97 = vmatprep.subr.mxu0 0.0
  %98 = vmatpush1.msra.mxu0 0.0
  %99 = vmatprep.subr.mxu0 0.0
  %100 = vmatpush1.msra.mxu0 0.0
  %101 = vmatprep.subr.mxu0 0.0
  %102 = vmatpush1.msra.mxu0 0.0
  %103 = vmatprep.subr.mxu0 0.0
  %104 = vmatpush1.msra.mxu0 0.0
  %105 = vmatprep.subr.mxu0 0.0
  %106 = vmatpush1.msra.mxu0 0.0
  %107 = vmatprep.subr.mxu0 0.0
  %108 = vmatpush1.msra.mxu0 0.0
  %109 = vmatprep.subr.mxu0 0.0
  %110 = vmatpush1.msra.mxu0 0.0
  %111 = vmatprep.subr.mxu0 0.0
  %112 = vmatpush1.msra.mxu0 0.0
  %113 = vmatprep.subr.mxu0 0.0
  %114 = vmatpush1.msra.mxu0 0.0
  %115 = vmatprep.subr.mxu0 0.0
  %116 = vmatpush1.msra.mxu0 0.0
  %117 = vmatprep.subr.mxu0 0.0
  %118 = vmatpush1.msra.mxu0 0.0
  %119 = vmatprep.subr.mxu0 0.0
  %120 = vmatpush1.msra.mxu0 0.0
  %121 = vmatprep.subr.mxu0 0.0
  %122 = vmatpush1.msra.mxu0 0.0
  %123 = vmatprep.subr.mxu0 0.0
  %124 = vmatpush1.msra.mxu0 0.0
  %125 = vmatprep.subr.mxu0 0.0
  %126 = vmatpush1.msra.mxu0 0.0
  %127 = vmatprep.mubr.f32.mxu0 0.0
  %128 = vmatmul.mubr.f32.gmra.mrb[0].mxu0 %v32
  %v129 = vpop.f32.mrb[0].mxu0
  %v130 = vadd.f32 %v61, %v129
  %v131 = vpop.f32.mrb[0].mxu0
  %132 = vmatprep.mubr.f32.mxu0 0.0
  %133 = vmatmul.mubr.f32.gmra.mrb[0].mxu0 %v33
  %v134 = vpop.f32.mrb[0].mxu0
  %v135 = vadd.f32 %v61, %v134
  %v136 = vpop.f32.mrb[0].mxu0
  %137 = vmatprep.mubr.f32.mxu0 0.0
  %138 = vmatmul.mubr.f32.gmra.mrb[0].mxu0 %v34
  %v139 = vpop.f32.mrb[0].mxu0
  %v140 = vadd.f32 %v61, %v139
  %v141 = vpop.f32.mrb[0].mxu0
  %142 = vmatprep.mubr.f32.mxu0 0.0
  %143 = vmatmul.mubr.f32.gmra.mrb[0].mxu0 %v35
  %v144 = vpop.f32.mrb[0].mxu0
  %v145 = vadd.f32 %v61, %v144
  %v146 = vpop.f32.mrb[0].mxu0
  %147 = vmatprep.mubr.f32.mxu0 0.0
  %148 = vmatmul.mubr.f32.gmra.mrb[0].mxu0 %v36
  %v149 = vpop.f32.mrb[0].mxu0
  %v150 = vadd.f32 %v61, %v149
  %v151 = vpop.f32.mrb[0].mxu0
  %152 = vmatprep.mubr.f32.mxu0 0.0
  %153 = vmatmul.mubr.f32.gmra.mrb[0].mxu0 %v37
  %v154 = vpop.f32.mrb[0].mxu0
  %v155 = vadd.f32 %v61, %v154
  %v156 = vpop.f32.mrb[0].mxu0
  %157 = vmatprep.mubr.f32.mxu0 0.0
  %158 = vmatmul.mubr.f32.gmra.mrb[0].mxu0 %v38
  %v159 = vpop.f32.mrb[0].mxu0
  %v160 = vadd.f32 %v61, %v159
  %v161 = vpop.f32.mrb[0].mxu0
  %162 = vmatprep.mubr.f32.mxu0 0.0
  %163 = vmatmul.mubr.f32.gmra.mrb[0].mxu0 %v39
  %v164 = vpop.f32.mrb[0].mxu0
  %v165 = vadd.f32 %v61, %v164
  %v166 = vpop.f32.mrb[0].mxu0
  %167 = vdwg.mxu0
  %168 = vst [vmem:[#allocation2] sm:$0xff] %v130
  %169 = vst [vmem:[#allocation2 + $0x8] sm:$0xff] %v135
  %170 = vst [vmem:[#allocation2 + $0x10] sm:$0xff] %v140
  %171 = vst [vmem:[#allocation2 + $0x18] sm:$0xff] %v145
  %172 = vst [vmem:[#allocation2 + $0x20] sm:$0xff] %v150
  %173 = vst [vmem:[#allocation2 + $0x28] sm:$0xff] %v155
  %174 = vst [vmem:[#allocation2 + $0x30] sm:$0xff] %v160
  %175 = vst [vmem:[#allocation2 + $0x38] sm:$0xff] %v165
  %v176 = vld [vmem:[%s2] sm:$0xff]
  %v177 = vld [vmem:[%s2 + $0x8] sm:$0xff]
  %v178 = vld [vmem:[%s2 + $0x10] sm:$0xff]
  %v179 = vld [vmem:[%s2 + $0x18] sm:$0xff]
  %v180 = vld [vmem:[%s2 + $0x20] sm:$0xff]
  %v181 = vld [vmem:[%s2 + $0x28] sm:$0xff]
  %v182 = vld [vmem:[%s2 + $0x30] sm:$0xff]
  %v183 = vld [vmem:[%s2 + $0x38] sm:$0xff]
  %v184 = vld [vmem:[%s2 + $0x40] sm:$0xff]
  %v185 = vld [vmem:[%s2 + $0x48] sm:$0xff]
  %v186 = vld [vmem:[%s2 + $0x50] sm:$0xff]
  %v187 = vld [vmem:[%s2 + $0x58] sm:$0xff]
  %v188 = vld [vmem:[%s2 + $0x60] sm:$0xff]
  %v189 = vld [vmem:[%s2 + $0x68] sm:$0xff]
  %v190 = vld [vmem:[%s2 + $0x70] sm:$0xff]
  %v191 = vld [vmem:[%s2 + $0x78] sm:$0xff]
  %v192 = vld [vmem:[#allocation2] sm:$0xff]
  %193 = vmatprep.subr.mxu0 0.0
  %194 = vmatpush1.msra.mxu0 %v176
  %195 = vmatprep.subr.mxu0 0.0
  %196 = vmatpush1.msra.mxu0 %v177
  %197 = vmatprep.subr.mxu0 0.0
  %198 = vmatpush1.msra.mxu0 %v178
  %199 = vmatprep.subr.mxu0 0.0
  %200 = vmatpush1.msra.mxu0 %v179
  %201 = vmatprep.subr.mxu0 0.0
  %202 = vmatpush1.msra.mxu0 %v180
  %203 = vmatprep.subr.mxu0 0.0
  %204 = vmatpush1.msra.mxu0 %v181
  %205 = vmatprep.subr.mxu0 0.0
  %206 = vmatpush1.msra.mxu0 %v182
  %207 = vmatprep.subr.mxu0 0.0
  %208 = vmatpush1.msra.mxu0 %v183
  %209 = vmatprep.subr.mxu0 0.0
  %210 = vmatpush1.msra.mxu0 %v184
  %211 = vmatprep.subr.mxu0 0.0
  %212 = vmatpush1.msra.mxu0 %v185
  %213 = vmatprep.subr.mxu0 0.0
  %214 = vmatpush1.msra.mxu0 %v186
  %215 = vmatprep.subr.mxu0 0.0
  %216 = vmatpush1.msra.mxu0 %v187
  %217 = vmatprep.subr.mxu0 0.0
  %218 = vmatpush1.msra.mxu0 %v188
  %219 = vmatprep.subr.mxu0 0.0
  %220 = vmatpush1.msra.mxu0 %v189
  %221 = vmatprep.subr.mxu0 0.0
  %222 = vmatpush1.msra.mxu0 %v190
  %223 = vmatprep.subr.mxu0 0.0
  %224 = vmatpush1.msra.mxu0 %v191
  %225 = vmatprep.subr.mxu0 0.0
  %226 = vmatpush1.msra.mxu0 0.0
  %227 = vmatprep.subr.mxu0 0.0
  %228 = vmatpush1.msra.mxu0 0.0
  %229 = vmatprep.subr.mxu0 0.0
  %230 = vmatpush1.msra.mxu0 0.0
  %231 = vmatprep.subr.mxu0 0.0
  %232 = vmatpush1.msra.mxu0 0.0
  %233 = vmatprep.subr.mxu0 0.0
  %234 = vmatpush1.msra.mxu0 0.0
  %235 = vmatprep.subr.mxu0 0.0
  %236 = vmatpush1.msra.mxu0 0.0
  %237 = vmatprep.subr.mxu0 0.0
  %238 = vmatpush1.msra.mxu0 0.0
  %239 = vmatprep.subr.mxu0 0.0
  %240 = vmatpush1.msra.mxu0 0.0
  %241 = vmatprep.subr.mxu0 0.0
  %242 = vmatpush1.msra.mxu0 0.0
  %243 = vmatprep.subr.mxu0 0.0
  %244 = vmatpush1.msra.mxu0 0.0
  %245 = vmatprep.subr.mxu0 0.0
  %246 = vmatpush1.msra.mxu0 0.0
  %247 = vmatprep.subr.mxu0 0.0
  %248 = vmatpush1.msra.mxu0 0.0
  %249 = vmatprep.subr.mxu0 0.0
  %250 = vmatpush1.msra.mxu0 0.0
  %251 = vmatprep.subr.mxu0 0.0
  %252 = vmatpush1.msra.mxu0 0.0
  %253 = vmatprep.subr.mxu0 0.0
  %254 = vmatpush1.msra.mxu0 0.0
  %255 = vmatprep.subr.mxu0 0.0
  %256 = vmatpush1.msra.mxu0 0.0
  %257 = vmatprep.mubr.f32.mxu0 0.0
  %258 = vmatmul.mubr.f32.gmra.mrb[0].mxu0 0.0
  %v259 = vpop.f32.mrb[0].mxu0
  %v260 = vadd.f32 0.0, %v259
  %v261 = vpop.f32.mrb[0].mxu0
  %262 = vdwg.mxu0
  %v263 = vadd.f32 %v192, %v260
  %v264 = vtanh.pop %v263
  %265 = vst [vmem:[#allocation2] sm:$0xff] %v264
  %s266 = scalar_lea.vmem [#allocation2], 8
  %v267 = vld [vmem:[%s266] sm:$0xff]
  %268 = vmatprep.subr.mxu0 0.0
  %269 = vmatpush1.msra.mxu0 %v176
  %270 = vmatprep.subr.mxu0 0.0
  %271 = vmatpush1.msra.mxu0 %v177
  %272 = vmatprep.subr.mxu0 0.0
  %273 = vmatpush1.msra.mxu0 %v178
  %274 = vmatprep.subr.mxu0 0.0
  %275 = vmatpush1.msra.mxu0 %v179
  %276 = vmatprep.subr.mxu0 0.0
  %277 = vmatpush1.msra.mxu0 %v180
  %278 = vmatprep.subr.mxu0 0.0
  %279 = vmatpush1.msra.mxu0 %v181
  %280 = vmatprep.subr.mxu0 0.0
  %281 = vmatpush1.msra.mxu0 %v182
  %282 = vmatprep.subr.mxu0 0.0
  %283 = vmatpush1.msra.mxu0 %v183
  %284 = vmatprep.subr.mxu0 0.0
  %285 = vmatpush1.msra.mxu0 %v184
  %286 = vmatprep.subr.mxu0 0.0
  %287 = vmatpush1.msra.mxu0 %v185
  %288 = vmatprep.subr.mxu0 0.0
  %289 = vmatpush1.msra.mxu0 %v186
  %290 = vmatprep.subr.mxu0 0.0
  %291 = vmatpush1.msra.mxu0 %v187
  %292 = vmatprep.subr.mxu0 0.0
  %293 = vmatpush1.msra.mxu0 %v188
  %294 = vmatprep.subr.mxu0 0.0
  %295 = vmatpush1.msra.mxu0 %v189
  %296 = vmatprep.subr.mxu0 0.0
  %297 = vmatpush1.msra.mxu0 %v190
  %298 = vmatprep.subr.mxu0 0.0
  %299 = vmatpush1.msra.mxu0 %v191
  %300 = vmatprep.subr.mxu0 0.0
  %301 = vmatpush1.msra.mxu0 0.0
  %302 = vmatprep.subr.mxu0 0.0
  %303 = vmatpush1.msra.mxu0 0.0
  %304 = vmatprep.subr.mxu0 0.0
  %305 = vmatpush1.msra.mxu0 0.0
  %306 = vmatprep.subr.mxu0 0.0
  %307 = vmatpush1.msra.mxu0 0.0
  %308 = vmatprep.subr.mxu0 0.0
  %309 = vmatpush1.msra.mxu0 0.0
  %310 = vmatprep.subr.mxu0 0.0
  %311 = vmatpush1.msra.mxu0 0.0
  %312 = vmatprep.subr.mxu0 0.0
  %313 = vmatpush1.msra.mxu0 0.0
  %314 = vmatprep.subr.mxu0 0.0
  %315 = vmatpush1.msra.mxu0 0.0
  %316 = vmatprep.subr.mxu0 0.0
  %317 = vmatpush1.msra.mxu0 0.0
  %318 = vmatprep.subr.mxu0 0.0
  %319 = vmatpush1.msra.mxu0 0.0
  %320 = vmatprep.subr.mxu0 0.0
  %321 = vmatpush1.msra.mxu0 0.0
  %322 = vmatprep.subr.mxu0 0.0
  %323 = vmatpush1.msra.mxu0 0.0
  %324 = vmatprep.subr.mxu0 0.0
  %325 = vmatpush1.msra.mxu0 0.0
  %326 = vmatprep.subr.mxu0 0.0
  %327 = vmatpush1.msra.mxu0 0.0
  %328 = vmatprep.subr.mxu0 0.0
  %329 = vmatpush1.msra.mxu0 0.0
  %330 = vmatprep.subr.mxu0 0.0
  %331 = vmatpush1.msra.mxu0 0.0
  %332 = vmatprep.mubr.f32.mxu0 0.0
  %333 = vmatmul.mubr.f32.gmra.mrb[0].mxu0 %v264
  %v334 = vpop.f32.mrb[0].mxu0
  %v335 = vadd.f32 0.0, %v334
  %v336 = vpop.f32.mrb[0].mxu0
  %337 = vdwg.mxu0
  %v338 = vadd.f32 %v267, %v335
  %v339 = vtanh.pop %v338
  %340 = vst [vmem:[%s266] sm:$0xff] %v339
  %s341 = scalar_lea.vmem [#allocation2], 16
  %v342 = vld [vmem:[%s341] sm:$0xff]
  %343 = vmatprep.subr.mxu0 0.0
  %344 = vmatpush1.msra.mxu0 %v176
  %345 = vmatprep.subr.mxu0 0.0
  %346 = vmatpush1.msra.mxu0 %v177
  %347 = vmatprep.subr.mxu0 0.0
  %348 = vmatpush1.msra.mxu0 %v178
  %349 = vmatprep.subr.mxu0 0.0
  %350 = vmatpush1.msra.mxu0 %v179
  %351 = vmatprep.subr.mxu0 0.0
  %352 = vmatpush1.msra.mxu0 %v180
  %353 = vmatprep.subr.mxu0 0.0
  %354 = vmatpush1.msra.mxu0 %v181
  %355 = vmatprep.subr.mxu0 0.0
  %356 = vmatpush1.msra.mxu0 %v182
  %357 = vmatprep.subr.mxu0 0.0
  %358 = vmatpush1.msra.mxu0 %v183
  %359 = vmatprep.subr.mxu0 0.0
  %360 = vmatpush1.msra.mxu0 %v184
  %361 = vmatprep.subr.mxu0 0.0
  %362 = vmatpush1.msra.mxu0 %v185
  %363 = vmatprep.subr.mxu0 0.0
  %364 = vmatpush1.msra.mxu0 %v186
  %365 = vmatprep.subr.mxu0 0.0
  %366 = vmatpush1.msra.mxu0 %v187
  %367 = vmatprep.subr.mxu0 0.0
  %368 = vmatpush1.msra.mxu0 %v188
  %369 = vmatprep.subr.mxu0 0.0
  %370 = vmatpush1.msra.mxu0 %v189
  %371 = vmatprep.subr.mxu0 0.0
  %372 = vmatpush1.msra.mxu0 %v190
  %373 = vmatprep.subr.mxu0 0.0
  %374 = vmatpush1.msra.mxu0 %v191
  %375 = vmatprep.subr.mxu0 0.0
  %376 = vmatpush1.msra.mxu0 0.0
  %377 = vmatprep.subr.mxu0 0.0
  %378 = vmatpush1.msra.mxu0 0.0
  %379 = vmatprep.subr.mxu0 0.0
  %380 = vmatpush1.msra.mxu0 0.0
  %381 = vmatprep.subr.mxu0 0.0
  %382 = vmatpush1.msra.mxu0 0.0
  %383 = vmatprep.subr.mxu0 0.0
  %384 = vmatpush1.msra.mxu0 0.0
  %385 = vmatprep.subr.mxu0 0.0
  %386 = vmatpush1.msra.mxu0 0.0
  %387 = vmatprep.subr.mxu0 0.0
  %388 = vmatpush1.msra.mxu0 0.0
  %389 = vmatprep.subr.mxu0 0.0
  %390 = vmatpush1.msra.mxu0 0.0
  %391 = vmatprep.subr.mxu0 0.0
  %392 = vmatpush1.msra.mxu0 0.0
  %393 = vmatprep.subr.mxu0 0.0
  %394 = vmatpush1.msra.mxu0 0.0
  %395 = vmatprep.subr.mxu0 0.0
  %396 = vmatpush1.msra.mxu0 0.0
  %397 = vmatprep.subr.mxu0 0.0
  %398 = vmatpush1.msra.mxu0 0.0
  %399 = vmatprep.subr.mxu0 0.0
  %400 = vmatpush1.msra.mxu0 0.0
  %401 = vmatprep.subr.mxu0 0.0
  %402 = vmatpush1.msra.mxu0 0.0
  %403 = vmatprep.subr.mxu0 0.0
  %404 = vmatpush1.msra.mxu0 0.0
  %405 = vmatprep.subr.mxu0 0.0
  %406 = vmatpush1.msra.mxu0 0.0
  %407 = vmatprep.mubr.f32.mxu0 0.0
  %408 = vmatmul.mubr.f32.gmra.mrb[0].mxu0 %v339
  %v409 = vpop.f32.mrb[0].mxu0
  %v410 = vadd.f32 0.0, %v409
  %v411 = vpop.f32.mrb[0].mxu0
  %412 = vdwg.mxu0
  %v413 = vadd.f32 %v342, %v410
  %v414 = vtanh.pop %v413
  %415 = vst [vmem:[%s341] sm:$0xff] %v414
  %s416 = scalar_lea.vmem [#allocation2], 24
  %v417 = vld [vmem:[%s416] sm:$0xff]
  %418 = vmatprep.subr.mxu0 0.0
  %419 = vmatpush1.msra.mxu0 %v176
  %420 = vmatprep.subr.mxu0 0.0
  %421 = vmatpush1.msra.mxu0 %v177
  %422 = vmatprep.subr.mxu0 0.0
  %423 = vmatpush1.msra.mxu0 %v178
  %424 = vmatprep.subr.mxu0 0.0
  %425 = vmatpush1.msra.mxu0 %v179
  %426 = vmatprep.subr.mxu0 0.0
  %427 = vmatpush1.msra.mxu0 %v180
  %428 = vmatprep.subr.mxu0 0.0
  %429 = vmatpush1.msra.mxu0 %v181
  %430 = vmatprep.subr.mxu0 0.0
  %431 = vmatpush1.msra.mxu0 %v182
  %432 = vmatprep.subr.mxu0 0.0
  %433 = vmatpush1.msra.mxu0 %v183
  %434 = vmatprep.subr.mxu0 0.0
  %435 = vmatpush1.msra.mxu0 %v184
  %436 = vmatprep.subr.mxu0 0.0
  %437 = vmatpush1.msra.mxu0 %v185
  %438 = vmatprep.subr.mxu0 0.0
  %439 = vmatpush1.msra.mxu0 %v186
  %440 = vmatprep.subr.mxu0 0.0
  %441 = vmatpush1.msra.mxu0 %v187
  %442 = vmatprep.subr.mxu0 0.0
  %443 = vmatpush1.msra.mxu0 %v188
  %444 = vmatprep.subr.mxu0 0.0
  %445 = vmatpush1.msra.mxu0 %v189
  %446 = vmatprep.subr.mxu0 0.0
  %447 = vmatpush1.msra.mxu0 %v190
  %448 = vmatprep.subr.mxu0 0.0
  %449 = vmatpush1.msra.mxu0 %v191
  %450 = vmatprep.subr.mxu0 0.0
  %451 = vmatpush1.msra.mxu0 0.0
  %452 = vmatprep.subr.mxu0 0.0
  %453 = vmatpush1.msra.mxu0 0.0
  %454 = vmatprep.subr.mxu0 0.0
  %455 = vmatpush1.msra.mxu0 0.0
  %456 = vmatprep.subr.mxu0 0.0
  %457 = vmatpush1.msra.mxu0 0.0
  %458 = vmatprep.subr.mxu0 0.0
  %459 = vmatpush1.msra.mxu0 0.0
  %460 = vmatprep.subr.mxu0 0.0
  %461 = vmatpush1.msra.mxu0 0.0
  %462 = vmatprep.subr.mxu0 0.0
  %463 = vmatpush1.msra.mxu0 0.0
  %464 = vmatprep.subr.mxu0 0.0
  %465 = vmatpush1.msra.mxu0 0.0
  %466 = vmatprep.subr.mxu0 0.0
  %467 = vmatpush1.msra.mxu0 0.0
  %468 = vmatprep.subr.mxu0 0.0
  %469 = vmatpush1.msra.mxu0 0.0
  %470 = vmatprep.subr.mxu0 0.0
  %471 = vmatpush1.msra.mxu0 0.0
  %472 = vmatprep.subr.mxu0 0.0
  %473 = vmatpush1.msra.mxu0 0.0
  %474 = vmatprep.subr.mxu0 0.0
  %475 = vmatpush1.msra.mxu0 0.0
  %476 = vmatprep.subr.mxu0 0.0
  %477 = vmatpush1.msra.mxu0 0.0
  %478 = vmatprep.subr.mxu0 0.0
  %479 = vmatpush1.msra.mxu0 0.0
  %480 = vmatprep.subr.mxu0 0.0
  %481 = vmatpush1.msra.mxu0 0.0
  %482 = vmatprep.mubr.f32.mxu0 0.0
  %483 = vmatmul.mubr.f32.gmra.mrb[0].mxu0 %v414
  %v484 = vpop.f32.mrb[0].mxu0
  %v485 = vadd.f32 0.0, %v484
  %v486 = vpop.f32.mrb[0].mxu0
  %487 = vdwg.mxu0
  %v488 = vadd.f32 %v417, %v485
  %v489 = vtanh.pop %v488
  %490 = vst [vmem:[%s416] sm:$0xff] %v489
  %s491 = scalar_lea.vmem [#allocation2], 32
  %v492 = vld [vmem:[%s491] sm:$0xff]
  %493 = vmatprep.subr.mxu0 0.0
  %494 = vmatpush1.msra.mxu0 %v176
  %495 = vmatprep.subr.mxu0 0.0
  %496 = vmatpush1.msra.mxu0 %v177
  %497 = vmatprep.subr.mxu0 0.0
  %498 = vmatpush1.msra.mxu0 %v178
  %499 = vmatprep.subr.mxu0 0.0
  %500 = vmatpush1.msra.mxu0 %v179
  %501 = vmatprep.subr.mxu0 0.0
  %502 = vmatpush1.msra.mxu0 %v180
  %503 = vmatprep.subr.mxu0 0.0
  %504 = vmatpush1.msra.mxu0 %v181
  %505 = vmatprep.subr.mxu0 0.0
  %506 = vmatpush1.msra.mxu0 %v182
  %507 = vmatprep.subr.mxu0 0.0
  %508 = vmatpush1.msra.mxu0 %v183
  %509 = vmatprep.subr.mxu0 0.0
  %510 = vmatpush1.msra.mxu0 %v184
  %511 = vmatprep.subr.mxu0 0.0
  %512 = vmatpush1.msra.mxu0 %v185
  %513 = vmatprep.subr.mxu0 0.0
  %514 = vmatpush1.msra.mxu0 %v186
  %515 = vmatprep.subr.mxu0 0.0
  %516 = vmatpush1.msra.mxu0 %v187
  %517 = vmatprep.subr.mxu0 0.0
  %518 = vmatpush1.msra.mxu0 %v188
  %519 = vmatprep.subr.mxu0 0.0
  %520 = vmatpush1.msra.mxu0 %v189
  %521 = vmatprep.subr.mxu0 0.0
  %522 = vmatpush1.msra.mxu0 %v190
  %523 = vmatprep.subr.mxu0 0.0
  %524 = vmatpush1.msra.mxu0 %v191
  %525 = vmatprep.subr.mxu0 0.0
  %526 = vmatpush1.msra.mxu0 0.0
  %527 = vmatprep.subr.mxu0 0.0
  %528 = vmatpush1.msra.mxu0 0.0
  %529 = vmatprep.subr.mxu0 0.0
  %530 = vmatpush1.msra.mxu0 0.0
  %531 = vmatprep.subr.mxu0 0.0
  %532 = vmatpush1.msra.mxu0 0.0
  %533 = vmatprep.subr.mxu0 0.0
  %534 = vmatpush1.msra.mxu0 0.0
  %535 = vmatprep.subr.mxu0 0.0
  %536 = vmatpush1.msra.mxu0 0.0
  %537 = vmatprep.subr.mxu0 0.0
  %538 = vmatpush1.msra.mxu0 0.0
  %539 = vmatprep.subr.mxu0 0.0
  %540 = vmatpush1.msra.mxu0 0.0
  %541 = vmatprep.subr.mxu0 0.0
  %542 = vmatpush1.msra.mxu0 0.0
  %543 = vmatprep.subr.mxu0 0.0
  %544 = vmatpush1.msra.mxu0 0.0
  %545 = vmatprep.subr.mxu0 0.0
  %546 = vmatpush1.msra.mxu0 0.0
  %547 = vmatprep.subr.mxu0 0.0
  %548 = vmatpush1.msra.mxu0 0.0
  %549 = vmatprep.subr.mxu0 0.0
  %550 = vmatpush1.msra.mxu0 0.0
  %551 = vmatprep.subr.mxu0 0.0
  %552 = vmatpush1.msra.mxu0 0.0
  %553 = vmatprep.subr.mxu0 0.0
  %554 = vmatpush1.msra.mxu0 0.0
  %555 = vmatprep.subr.mxu0 0.0
  %556 = vmatpush1.msra.mxu0 0.0
  %557 = vmatprep.mubr.f32.mxu0 0.0
  %558 = vmatmul.mubr.f32.gmra.mrb[0].mxu0 %v489
  %v559 = vpop.f32.mrb[0].mxu0
  %v560 = vadd.f32 0.0, %v559
  %v561 = vpop.f32.mrb[0].mxu0
  %562 = vdwg.mxu0
  %v563 = vadd.f32 %v492, %v560
  %v564 = vtanh.pop %v563
  %565 = vst [vmem:[%s491] sm:$0xff] %v564
  %s566 = scalar_lea.vmem [#allocation2], 40
  %v567 = vld [vmem:[%s566] sm:$0xff]
  %568 = vmatprep.subr.mxu0 0.0
  %569 = vmatpush1.msra.mxu0 %v176
  %570 = vmatprep.subr.mxu0 0.0
  %571 = vmatpush1.msra.mxu0 %v177
  %572 = vmatprep.subr.mxu0 0.0
  %573 = vmatpush1.msra.mxu0 %v178
  %574 = vmatprep.subr.mxu0 0.0
  %575 = vmatpush1.msra.mxu0 %v179
  %576 = vmatprep.subr.mxu0 0.0
  %577 = vmatpush1.msra.mxu0 %v180
  %578 = vmatprep.subr.mxu0 0.0
  %579 = vmatpush1.msra.mxu0 %v181
  %580 = vmatprep.subr.mxu0 0.0
  %581 = vmatpush1.msra.mxu0 %v182
  %582 = vmatprep.subr.mxu0 0.0
  %583 = vmatpush1.msra.mxu0 %v183
  %584 = vmatprep.subr.mxu0 0.0
  %585 = vmatpush1.msra.mxu0 %v184
  %586 = vmatprep.subr.mxu0 0.0
  %587 = vmatpush1.msra.mxu0 %v185
  %588 = vmatprep.subr.mxu0 0.0
  %589 = vmatpush1.msra.mxu0 %v186
  %590 = vmatprep.subr.mxu0 0.0
  %591 = vmatpush1.msra.mxu0 %v187
  %592 = vmatprep.subr.mxu0 0.0
  %593 = vmatpush1.msra.mxu0 %v188
  %594 = vmatprep.subr.mxu0 0.0
  %595 = vmatpush1.msra.mxu0 %v189
  %596 = vmatprep.subr.mxu0 0.0
  %597 = vmatpush1.msra.mxu0 %v190
  %598 = vmatprep.subr.mxu0 0.0
  %599 = vmatpush1.msra.mxu0 %v191
  %600 = vmatprep.subr.mxu0 0.0
  %601 = vmatpush1.msra.mxu0 0.0
  %602 = vmatprep.subr.mxu0 0.0
  %603 = vmatpush1.msra.mxu0 0.0
  %604 = vmatprep.subr.mxu0 0.0
  %605 = vmatpush1.msra.mxu0 0.0
  %606 = vmatprep.subr.mxu0 0.0
  %607 = vmatpush1.msra.mxu0 0.0
  %608 = vmatprep.subr.mxu0 0.0
  %609 = vmatpush1.msra.mxu0 0.0
  %610 = vmatprep.subr.mxu0 0.0
  %611 = vmatpush1.msra.mxu0 0.0
  %612 = vmatprep.subr.mxu0 0.0
  %613 = vmatpush1.msra.mxu0 0.0
  %614 = vmatprep.subr.mxu0 0.0
  %615 = vmatpush1.msra.mxu0 0.0
  %616 = vmatprep.subr.mxu0 0.0
  %617 = vmatpush1.msra.mxu0 0.0
  %618 = vmatprep.subr.mxu0 0.0
  %619 = vmatpush1.msra.mxu0 0.0
  %620 = vmatprep.subr.mxu0 0.0
  %621 = vmatpush1.msra.mxu0 0.0
  %622 = vmatprep.subr.mxu0 0.0
  %623 = vmatpush1.msra.mxu0 0.0
  %624 = vmatprep.subr.mxu0 0.0
  %625 = vmatpush1.msra.mxu0 0.0
  %626 = vmatprep.subr.mxu0 0.0
  %627 = vmatpush1.msra.mxu0 0.0
  %628 = vmatprep.subr.mxu0 0.0
  %629 = vmatpush1.msra.mxu0 0.0
  %630 = vmatprep.subr.mxu0 0.0
  %631 = vmatpush1.msra.mxu0 0.0
  %632 = vmatprep.mubr.f32.mxu0 0.0
  %633 = vmatmul.mubr.f32.gmra.mrb[0].mxu0 %v564
  %v634 = vpop.f32.mrb[0].mxu0
  %v635 = vadd.f32 0.0, %v634
  %v636 = vpop.f32.mrb[0].mxu0
  %637 = vdwg.mxu0
  %v638 = vadd.f32 %v567, %v635
  %v639 = vtanh.pop %v638
  %640 = vst [vmem:[%s566] sm:$0xff] %v639
  %s641 = scalar_lea.vmem [#allocation2], 48
  %v642 = vld [vmem:[%s641] sm:$0xff]
  %643 = vmatprep.subr.mxu0 0.0
  %644 = vmatpush1.msra.mxu0 %v176
  %645 = vmatprep.subr.mxu0 0.0
  %646 = vmatpush1.msra.mxu0 %v177
  %647 = vmatprep.subr.mxu0 0.0
  %648 = vmatpush1.msra.mxu0 %v178
  %649 = vmatprep.subr.mxu0 0.0
  %650 = vmatpush1.msra.mxu0 %v179
  %651 = vmatprep.subr.mxu0 0.0
  %652 = vmatpush1.msra.mxu0 %v180
  %653 = vmatprep.subr.mxu0 0.0
  %654 = vmatpush1.msra.mxu0 %v181
  %655 = vmatprep.subr.mxu0 0.0
  %656 = vmatpush1.msra.mxu0 %v182
  %657 = vmatprep.subr.mxu0 0.0
  %658 = vmatpush1.msra.mxu0 %v183
  %659 = vmatprep.subr.mxu0 0.0
  %660 = vmatpush1.msra.mxu0 %v184
  %661 = vmatprep.subr.mxu0 0.0
  %662 = vmatpush1.msra.mxu0 %v185
  %663 = vmatprep.subr.mxu0 0.0
  %664 = vmatpush1.msra.mxu0 %v186
  %665 = vmatprep.subr.mxu0 0.0
  %666 = vmatpush1.msra.mxu0 %v187
  %667 = vmatprep.subr.mxu0 0.0
  %668 = vmatpush1.msra.mxu0 %v188
  %669 = vmatprep.subr.mxu0 0.0
  %670 = vmatpush1.msra.mxu0 %v189
  %671 = vmatprep.subr.mxu0 0.0
  %672 = vmatpush1.msra.mxu0 %v190
  %673 = vmatprep.subr.mxu0 0.0
  %674 = vmatpush1.msra.mxu0 %v191
  %675 = vmatprep.subr.mxu0 0.0
  %676 = vmatpush1.msra.mxu0 0.0
  %677 = vmatprep.subr.mxu0 0.0
  %678 = vmatpush1.msra.mxu0 0.0
  %679 = vmatprep.subr.mxu0 0.0
  %680 = vmatpush1.msra.mxu0 0.0
  %681 = vmatprep.subr.mxu0 0.0
  %682 = vmatpush1.msra.mxu0 0.0
  %683 = vmatprep.subr.mxu0 0.0
  %684 = vmatpush1.msra.mxu0 0.0
  %685 = vmatprep.subr.mxu0 0.0
  %686 = vmatpush1.msra.mxu0 0.0
  %687 = vmatprep.subr.mxu0 0.0
  %688 = vmatpush1.msra.mxu0 0.0
  %689 = vmatprep.subr.mxu0 0.0
  %690 = vmatpush1.msra.mxu0 0.0
  %691 = vmatprep.subr.mxu0 0.0
  %692 = vmatpush1.msra.mxu0 0.0
  %693 = vmatprep.subr.mxu0 0.0
  %694 = vmatpush1.msra.mxu0 0.0
  %695 = vmatprep.subr.mxu0 0.0
  %696 = vmatpush1.msra.mxu0 0.0
  %697 = vmatprep.subr.mxu0 0.0
  %698 = vmatpush1.msra.mxu0 0.0
  %699 = vmatprep.subr.mxu0 0.0
  %700 = vmatpush1.msra.mxu0 0.0
  %701 = vmatprep.subr.mxu0 0.0
  %702 = vmatpush1.msra.mxu0 0.0
  %703 = vmatprep.subr.mxu0 0.0
  %704 = vmatpush1.msra.mxu0 0.0
  %705 = vmatprep.subr.mxu0 0.0
  %706 = vmatpush1.msra.mxu0 0.0
  %707 = vmatprep.mubr.f32.mxu0 0.0
  %708 = vmatmul.mubr.f32.gmra.mrb[0].mxu0 %v639
  %v709 = vpop.f32.mrb[0].mxu0
  %v710 = vadd.f32 0.0, %v709
  %v711 = vpop.f32.mrb[0].mxu0
  %712 = vdwg.mxu0
  %v713 = vadd.f32 %v642, %v710
  %v714 = vtanh.pop %v713
  %715 = vst [vmem:[%s641] sm:$0xff] %v714
  %s716 = scalar_lea.vmem [#allocation2], 56
  %v717 = vld [vmem:[%s716] sm:$0xff]
  %718 = vmatprep.subr.mxu0 0.0
  %719 = vmatpush1.msra.mxu0 %v176
  %720 = vmatprep.subr.mxu0 0.0
  %721 = vmatpush1.msra.mxu0 %v177
  %722 = vmatprep.subr.mxu0 0.0
  %723 = vmatpush1.msra.mxu0 %v178
  %724 = vmatprep.subr.mxu0 0.0
  %725 = vmatpush1.msra.mxu0 %v179
  %726 = vmatprep.subr.mxu0 0.0
  %727 = vmatpush1.msra.mxu0 %v180
  %728 = vmatprep.subr.mxu0 0.0
  %729 = vmatpush1.msra.mxu0 %v181
  %730 = vmatprep.subr.mxu0 0.0
  %731 = vmatpush1.msra.mxu0 %v182
  %732 = vmatprep.subr.mxu0 0.0
  %733 = vmatpush1.msra.mxu0 %v183
  %734 = vmatprep.subr.mxu0 0.0
  %735 = vmatpush1.msra.mxu0 %v184
  %736 = vmatprep.subr.mxu0 0.0
  %737 = vmatpush1.msra.mxu0 %v185
  %738 = vmatprep.subr.mxu0 0.0
  %739 = vmatpush1.msra.mxu0 %v186
  %740 = vmatprep.subr.mxu0 0.0
  %741 = vmatpush1.msra.mxu0 %v187
  %742 = vmatprep.subr.mxu0 0.0
  %743 = vmatpush1.msra.mxu0 %v188
  %744 = vmatprep.subr.mxu0 0.0
  %745 = vmatpush1.msra.mxu0 %v189
  %746 = vmatprep.subr.mxu0 0.0
  %747 = vmatpush1.msra.mxu0 %v190
  %748 = vmatprep.subr.mxu0 0.0
  %749 = vmatpush1.msra.mxu0 %v191
  %750 = vmatprep.subr.mxu0 0.0
  %751 = vmatpush1.msra.mxu0 0.0
  %752 = vmatprep.subr.mxu0 0.0
  %753 = vmatpush1.msra.mxu0 0.0
  %754 = vmatprep.subr.mxu0 0.0
  %755 = vmatpush1.msra.mxu0 0.0
  %756 = vmatprep.subr.mxu0 0.0
  %757 = vmatpush1.msra.mxu0 0.0
  %758 = vmatprep.subr.mxu0 0.0
  %759 = vmatpush1.msra.mxu0 0.0
  %760 = vmatprep.subr.mxu0 0.0
  %761 = vmatpush1.msra.mxu0 0.0
  %762 = vmatprep.subr.mxu0 0.0
  %763 = vmatpush1.msra.mxu0 0.0
  %764 = vmatprep.subr.mxu0 0.0
  %765 = vmatpush1.msra.mxu0 0.0
  %766 = vmatprep.subr.mxu0 0.0
  %767 = vmatpush1.msra.mxu0 0.0
  %768 = vmatprep.subr.mxu0 0.0
  %769 = vmatpush1.msra.mxu0 0.0
  %770 = vmatprep.subr.mxu0 0.0
  %771 = vmatpush1.msra.mxu0 0.0
  %772 = vmatprep.subr.mxu0 0.0
  %773 = vmatpush1.msra.mxu0 0.0
  %774 = vmatprep.subr.mxu0 0.0
  %775 = vmatpush1.msra.mxu0 0.0
  %776 = vmatprep.subr.mxu0 0.0
  %777 = vmatpush1.msra.mxu0 0.0
  %778 = vmatprep.subr.mxu0 0.0
  %779 = vmatpush1.msra.mxu0 0.0
  %780 = vmatprep.subr.mxu0 0.0
  %781 = vmatpush1.msra.mxu0 0.0
  %782 = vmatprep.mubr.f32.mxu0 0.0
  %783 = vmatmul.mubr.f32.gmra.mrb[0].mxu0 %v714
  %v784 = vpop.f32.mrb[0].mxu0
  %v785 = vadd.f32 0.0, %v784
  %v786 = vpop.f32.mrb[0].mxu0
  %787 = vdwg.mxu0
  %v788 = vadd.f32 %v717, %v785
  %v789 = vtanh.pop %v788
  %790 = vst [vmem:[%s716] sm:$0xff] %v789
  %v791 = vld [vmem:[#allocation2] sm:$0xff]
  %v792 = vld [vmem:[#allocation2 + $0x8] sm:$0xff]
  %v793 = vld [vmem:[#allocation2 + $0x10] sm:$0xff]
  %v794 = vld [vmem:[#allocation2 + $0x18] sm:$0xff]
  %v795 = vld [vmem:[#allocation2 + $0x20] sm:$0xff]
  %v796 = vld [vmem:[#allocation2 + $0x28] sm:$0xff]
  %v797 = vld [vmem:[#allocation2 + $0x30] sm:$0xff]
  %v798 = vld [vmem:[#allocation2 + $0x38] sm:$0xff]
  %v799 = vld [vmem:[%s4] sm:$0xff]
  %v800 = vld [vmem:[%s4 + $0x8] sm:$0xff]
  %v801 = vld [vmem:[%s4 + $0x10] sm:$0xff]
  %v802 = vld [vmem:[%s4 + $0x18] sm:$0xff]
  %v803 = vld [vmem:[%s4 + $0x20] sm:$0xff]
  %v804 = vld [vmem:[%s4 + $0x28] sm:$0xff]
  %v805 = vld [vmem:[%s4 + $0x30] sm:$0xff]
  %v806 = vld [vmem:[%s4 + $0x38] sm:$0xff]
  %v807 = vld [vmem:[%s4 + $0x40] sm:$0xff]
  %v808 = vld [vmem:[%s4 + $0x48] sm:$0xff]
  %v809 = vld [vmem:[%s4 + $0x50] sm:$0xff]
  %v810 = vld [vmem:[%s4 + $0x58] sm:$0xff]
  %v811 = vld [vmem:[%s4 + $0x60] sm:$0xff]
  %v812 = vld [vmem:[%s4 + $0x68] sm:$0xff]
  %v813 = vld [vmem:[%s4 + $0x70] sm:$0xff]
  %v814 = vld [vmem:[%s4 + $0x78] sm:$0xff]
  %v815 = vld [vmem:[%s6] sm:$0x1]
  %v817 = vlaneseq
  %v818 = vshrl.u32 %v817, 7
  %v819 = vsub.s32 0, %v818
  %v820 = vrot.slane %v815, %v819
  %822 = vmatprep.subr.mxu0 0.0
  %823 = vmatpush1.msra.mxu0 %v799
  %824 = vmatprep.subr.mxu0 0.0
  %825 = vmatpush1.msra.mxu0 %v800
  %826 = vmatprep.subr.mxu0 0.0
  %827 = vmatpush1.msra.mxu0 %v801
  %828 = vmatprep.subr.mxu0 0.0
  %829 = vmatpush1.msra.mxu0 %v802
  %830 = vmatprep.subr.mxu0 0.0
  %831 = vmatpush1.msra.mxu0 %v803
  %832 = vmatprep.subr.mxu0 0.0
  %833 = vmatpush1.msra.mxu0 %v804
  %834 = vmatprep.subr.mxu0 0.0
  %835 = vmatpush1.msra.mxu0 %v805
  %836 = vmatprep.subr.mxu0 0.0
  %837 = vmatpush1.msra.mxu0 %v806
  %838 = vmatprep.subr.mxu0 0.0
  %839 = vmatpush1.msra.mxu0 %v807
  %840 = vmatprep.subr.mxu0 0.0
  %841 = vmatpush1.msra.mxu0 %v808
  %842 = vmatprep.subr.mxu0 0.0
  %843 = vmatpush1.msra.mxu0 %v809
  %844 = vmatprep.subr.mxu0 0.0
  %845 = vmatpush1.msra.mxu0 %v810
  %846 = vmatprep.subr.mxu0 0.0
  %847 = vmatpush1.msra.mxu0 %v811
  %848 = vmatprep.subr.mxu0 0.0
  %849 = vmatpush1.msra.mxu0 %v812
  %850 = vmatprep.subr.mxu0 0.0
  %851 = vmatpush1.msra.mxu0 %v813
  %852 = vmatprep.subr.mxu0 0.0
  %853 = vmatpush1.msra.mxu0 %v814
  %854 = vmatprep.subr.mxu0 0.0
  %855 = vmatpush1.msra.mxu0 0.0
  %856 = vmatprep.subr.mxu0 0.0
  %857 = vmatpush1.msra.mxu0 0.0
  %858 = vmatprep.subr.mxu0 0.0
  %859 = vmatpush1.msra.mxu0 0.0
  %860 = vmatprep.subr.mxu0 0.0
  %861 = vmatpush1.msra.mxu0 0.0
  %862 = vmatprep.subr.mxu0 0.0
  %863 = vmatpush1.msra.mxu0 0.0
  %864 = vmatprep.subr.mxu0 0.0
  %865 = vmatpush1.msra.mxu0 0.0
  %866 = vmatprep.subr.mxu0 0.0
  %867 = vmatpush1.msra.mxu0 0.0
  %868 = vmatprep.subr.mxu0 0.0
  %869 = vmatpush1.msra.mxu0 0.0
  %870 = vmatprep.subr.mxu0 0.0
  %871 = vmatpush1.msra.mxu0 0.0
  %872 = vmatprep.subr.mxu0 0.0
  %873 = vmatpush1.msra.mxu0 0.0
  %874 = vmatprep.subr.mxu0 0.0
  %875 = vmatpush1.msra.mxu0 0.0
  %876 = vmatprep.subr.mxu0 0.0
  %877 = vmatpush1.msra.mxu0 0.0
  %878 = vmatprep.subr.mxu0 0.0
  %879 = vmatpush1.msra.mxu0 0.0
  %880 = vmatprep.subr.mxu0 0.0
  %881 = vmatpush1.msra.mxu0 0.0
  %882 = vmatprep.subr.mxu0 0.0
  %883 = vmatpush1.msra.mxu0 0.0
  %884 = vmatprep.subr.mxu0 0.0
  %885 = vmatpush1.msra.mxu0 0.0
  %886 = vmatprep.mubr.f32.mxu0 0.0
  %887 = vmatmul.mubr.f32.gmra.mrb[0].mxu0 %v791
  %v888 = vpop.f32.mrb[0].mxu0
  %v889 = vadd.f32 %v820, %v888
  %v890 = vpop.f32.mrb[0].mxu0
  %891 = vmatprep.mubr.f32.mxu0 0.0
  %892 = vmatmul.mubr.f32.gmra.mrb[0].mxu0 %v792
  %v893 = vpop.f32.mrb[0].mxu0
  %v894 = vadd.f32 %v820, %v893
  %v895 = vpop.f32.mrb[0].mxu0
  %896 = vmatprep.mubr.f32.mxu0 0.0
  %897 = vmatmul.mubr.f32.gmra.mrb[0].mxu0 %v793
  %v898 = vpop.f32.mrb[0].mxu0
  %v899 = vadd.f32 %v820, %v898
  %v900 = vpop.f32.mrb[0].mxu0
  %901 = vmatprep.mubr.f32.mxu0 0.0
  %902 = vmatmul.mubr.f32.gmra.mrb[0].mxu0 %v794
  %v903 = vpop.f32.mrb[0].mxu0
  %v904 = vadd.f32 %v820, %v903
  %v905 = vpop.f32.mrb[0].mxu0
  %906 = vmatprep.mubr.f32.mxu0 0.0
  %907 = vmatmul.mubr.f32.gmra.mrb[0].mxu0 %v795
  %v908 = vpop.f32.mrb[0].mxu0
  %v909 = vadd.f32 %v820, %v908
  %v910 = vpop.f32.mrb[0].mxu0
  %911 = vmatprep.mubr.f32.mxu0 0.0
  %912 = vmatmul.mubr.f32.gmra.mrb[0].mxu0 %v796
  %v913 = vpop.f32.mrb[0].mxu0
  %v914 = vadd.f32 %v820, %v913
  %v915 = vpop.f32.mrb[0].mxu0
  %916 = vmatprep.mubr.f32.mxu0 0.0
  %917 = vmatmul.mubr.f32.gmra.mrb[0].mxu0 %v797
  %v918 = vpop.f32.mrb[0].mxu0
  %v919 = vadd.f32 %v820, %v918
  %v920 = vpop.f32.mrb[0].mxu0
  %921 = vmatprep.mubr.f32.mxu0 0.0
  %922 = vmatmul.mubr.f32.gmra.mrb[0].mxu0 %v798
  %v923 = vpop.f32.mrb[0].mxu0
  %v924 = vadd.f32 %v820, %v923
  %v925 = vpop.f32.mrb[0].mxu0
  %926 = vdwg.mxu0
  %927 = vst [vmem:[#allocation2] sm:$0xff] %v889
  %928 = vst [vmem:[#allocation2 + $0x8] sm:$0xff] %v894
  %929 = vst [vmem:[#allocation2 + $0x10] sm:$0xff] %v899
  %930 = vst [vmem:[#allocation2 + $0x18] sm:$0xff] %v904
  %931 = vst [vmem:[#allocation2 + $0x20] sm:$0xff] %v909
  %932 = vst [vmem:[#allocation2 + $0x28] sm:$0xff] %v914
  %933 = vst [vmem:[#allocation2 + $0x30] sm:$0xff] %v919
  %934 = vst [vmem:[#allocation2 + $0x38] sm:$0xff] %v924
  %v935 = vld [vmem:[%s5] sm:$0xff]
  %v936 = vld [vmem:[%s5 + $0x8] sm:$0xff]
  %v937 = vld [vmem:[%s5 + $0x10] sm:$0xff]
  %v938 = vld [vmem:[%s5 + $0x18] sm:$0xff]
  %v939 = vld [vmem:[%s5 + $0x20] sm:$0xff]
  %v940 = vld [vmem:[%s5 + $0x28] sm:$0xff]
  %v941 = vld [vmem:[%s5 + $0x30] sm:$0xff]
  %v942 = vld [vmem:[%s5 + $0x38] sm:$0xff]
  %v943 = vld [vmem:[%s5 + $0x40] sm:$0xff]
  %v944 = vld [vmem:[%s5 + $0x48] sm:$0xff]
  %v945 = vld [vmem:[%s5 + $0x50] sm:$0xff]
  %v946 = vld [vmem:[%s5 + $0x58] sm:$0xff]
  %v947 = vld [vmem:[%s5 + $0x60] sm:$0xff]
  %v948 = vld [vmem:[%s5 + $0x68] sm:$0xff]
  %v949 = vld [vmem:[%s5 + $0x70] sm:$0xff]
  %v950 = vld [vmem:[%s5 + $0x78] sm:$0xff]
  %v951 = vld [vmem:[#allocation2] sm:$0xff]
  %952 = vmatprep.subr.mxu0 0.0
  %953 = vmatpush1.msra.mxu0 %v935
  %954 = vmatprep.subr.mxu0 0.0
  %955 = vmatpush1.msra.mxu0 %v936
  %956 = vmatprep.subr.mxu0 0.0
  %957 = vmatpush1.msra.mxu0 %v937
  %958 = vmatprep.subr.mxu0 0.0
  %959 = vmatpush1.msra.mxu0 %v938
  %960 = vmatprep.subr.mxu0 0.0
  %961 = vmatpush1.msra.mxu0 %v939
  %962 = vmatprep.subr.mxu0 0.0
  %963 = vmatpush1.msra.mxu0 %v940
  %964 = vmatprep.subr.mxu0 0.0
  %965 = vmatpush1.msra.mxu0 %v941
  %966 = vmatprep.subr.mxu0 0.0
  %967 = vmatpush1.msra.mxu0 %v942
  %968 = vmatprep.subr.mxu0 0.0
  %969 = vmatpush1.msra.mxu0 %v943
  %970 = vmatprep.subr.mxu0 0.0
  %971 = vmatpush1.msra.mxu0 %v944
  %972 = vmatprep.subr.mxu0 0.0
  %973 = vmatpush1.msra.mxu0 %v945
  %974 = vmatprep.subr.mxu0 0.0
  %975 = vmatpush1.msra.mxu0 %v946
  %976 = vmatprep.subr.mxu0 0.0
  %977 = vmatpush1.msra.mxu0 %v947
  %978 = vmatprep.subr.mxu0 0.0
  %979 = vmatpush1.msra.mxu0 %v948
  %980 = vmatprep.subr.mxu0 0.0
  %981 = vmatpush1.msra.mxu0 %v949
  %982 = vmatprep.subr.mxu0 0.0
  %983 = vmatpush1.msra.mxu0 %v950
  %984 = vmatprep.subr.mxu0 0.0
  %985 = vmatpush1.msra.mxu0 0.0
  %986 = vmatprep.subr.mxu0 0.0
  %987 = vmatpush1.msra.mxu0 0.0
  %988 = vmatprep.subr.mxu0 0.0
  %989 = vmatpush1.msra.mxu0 0.0
  %990 = vmatprep.subr.mxu0 0.0
  %991 = vmatpush1.msra.mxu0 0.0
  %992 = vmatprep.subr.mxu0 0.0
  %993 = vmatpush1.msra.mxu0 0.0
  %994 = vmatprep.subr.mxu0 0.0
  %995 = vmatpush1.msra.mxu0 0.0
  %996 = vmatprep.subr.mxu0 0.0
  %997 = vmatpush1.msra.mxu0 0.0
  %998 = vmatprep.subr.mxu0 0.0
  %999 = vmatpush1.msra.mxu0 0.0
  %1000 = vmatprep.subr.mxu0 0.0
  %1001 = vmatpush1.msra.mxu0 0.0
  %1002 = vmatprep.subr.mxu0 0.0
  %1003 = vmatpush1.msra.mxu0 0.0
  %1004 = vmatprep.subr.mxu0 0.0
  %1005 = vmatpush1.msra.mxu0 0.0
  %1006 = vmatprep.subr.mxu0 0.0
  %1007 = vmatpush1.msra.mxu0 0.0
  %1008 = vmatprep.subr.mxu0 0.0
  %1009 = vmatpush1.msra.mxu0 0.0
  %1010 = vmatprep.subr.mxu0 0.0
  %1011 = vmatpush1.msra.mxu0 0.0
  %1012 = vmatprep.subr.mxu0 0.0
  %1013 = vmatpush1.msra.mxu0 0.0
  %1014 = vmatprep.subr.mxu0 0.0
  %1015 = vmatpush1.msra.mxu0 0.0
  %1016 = vmatprep.mubr.f32.mxu0 0.0
  %1017 = vmatmul.mubr.f32.gmra.mrb[0].mxu0 0.0
  %v1018 = vpop.f32.mrb[0].mxu0
  %v1019 = vadd.f32 0.0, %v1018
  %v1020 = vpop.f32.mrb[0].mxu0
  %1021 = vdwg.mxu0
  %v1022 = vadd.f32 %v951, %v1019
  %v1023 = vtanh.pop %v1022
  %v1024 = vld [vmem:[%s266] sm:$0xff]
  %1025 = vmatprep.subr.mxu0 0.0
  %1026 = vmatpush1.msra.mxu0 %v935
  %1027 = vmatprep.subr.mxu0 0.0
  %1028 = vmatpush1.msra.mxu0 %v936
  %1029 = vmatprep.subr.mxu0 0.0
  %1030 = vmatpush1.msra.mxu0 %v937
  %1031 = vmatprep.subr.mxu0 0.0
  %1032 = vmatpush1.msra.mxu0 %v938
  %1033 = vmatprep.subr.mxu0 0.0
  %1034 = vmatpush1.msra.mxu0 %v939
  %1035 = vmatprep.subr.mxu0 0.0
  %1036 = vmatpush1.msra.mxu0 %v940
  %1037 = vmatprep.subr.mxu0 0.0
  %1038 = vmatpush1.msra.mxu0 %v941
  %1039 = vmatprep.subr.mxu0 0.0
  %1040 = vmatpush1.msra.mxu0 %v942
  %1041 = vmatprep.subr.mxu0 0.0
  %1042 = vmatpush1.msra.mxu0 %v943
  %1043 = vmatprep.subr.mxu0 0.0
  %1044 = vmatpush1.msra.mxu0 %v944
  %1045 = vmatprep.subr.mxu0 0.0
  %1046 = vmatpush1.msra.mxu0 %v945
  %1047 = vmatprep.subr.mxu0 0.0
  %1048 = vmatpush1.msra.mxu0 %v946
  %1049 = vmatprep.subr.mxu0 0.0
  %1050 = vmatpush1.msra.mxu0 %v947
  %1051 = vmatprep.subr.mxu0 0.0
  %1052 = vmatpush1.msra.mxu0 %v948
  %1053 = vmatprep.subr.mxu0 0.0
  %1054 = vmatpush1.msra.mxu0 %v949
  %1055 = vmatprep.subr.mxu0 0.0
  %1056 = vmatpush1.msra.mxu0 %v950
  %1057 = vmatprep.subr.mxu0 0.0
  %1058 = vmatpush1.msra.mxu0 0.0
  %1059 = vmatprep.subr.mxu0 0.0
  %1060 = vmatpush1.msra.mxu0 0.0
  %1061 = vmatprep.subr.mxu0 0.0
  %1062 = vmatpush1.msra.mxu0 0.0
  %1063 = vmatprep.subr.mxu0 0.0
  %1064 = vmatpush1.msra.mxu0 0.0
  %1065 = vmatprep.subr.mxu0 0.0
  %1066 = vmatpush1.msra.mxu0 0.0
  %1067 = vmatprep.subr.mxu0 0.0
  %1068 = vmatpush1.msra.mxu0 0.0
  %1069 = vmatprep.subr.mxu0 0.0
  %1070 = vmatpush1.msra.mxu0 0.0
  %1071 = vmatprep.subr.mxu0 0.0
  %1072 = vmatpush1.msra.mxu0 0.0
  %1073 = vmatprep.subr.mxu0 0.0
  %1074 = vmatpush1.msra.mxu0 0.0
  %1075 = vmatprep.subr.mxu0 0.0
  %1076 = vmatpush1.msra.mxu0 0.0
  %1077 = vmatprep.subr.mxu0 0.0
  %1078 = vmatpush1.msra.mxu0 0.0
  %1079 = vmatprep.subr.mxu0 0.0
  %1080 = vmatpush1.msra.mxu0 0.0
  %1081 = vmatprep.subr.mxu0 0.0
  %1082 = vmatpush1.msra.mxu0 0.0
  %1083 = vmatprep.subr.mxu0 0.0
  %1084 = vmatpush1.msra.mxu0 0.0
  %1085 = vmatprep.subr.mxu0 0.0
  %1086 = vmatpush1.msra.mxu0 0.0
  %1087 = vmatprep.subr.mxu0 0.0
  %1088 = vmatpush1.msra.mxu0 0.0
  %1089 = vmatprep.mubr.f32.mxu0 0.0
  %1090 = vmatmul.mubr.f32.gmra.mrb[0].mxu0 %v1023
  %v1091 = vpop.f32.mrb[0].mxu0
  %v1092 = vadd.f32 0.0, %v1091
  %v1093 = vpop.f32.mrb[0].mxu0
  %1094 = vdwg.mxu0
  %v1095 = vadd.f32 %v1024, %v1092
  %v1096 = vtanh.pop %v1095
  %v1097 = vld [vmem:[%s341] sm:$0xff]
  %1098 = vmatprep.subr.mxu0 0.0
  %1099 = vmatpush1.msra.mxu0 %v935
  %1100 = vmatprep.subr.mxu0 0.0
  %1101 = vmatpush1.msra.mxu0 %v936
  %1102 = vmatprep.subr.mxu0 0.0
  %1103 = vmatpush1.msra.mxu0 %v937
  %1104 = vmatprep.subr.mxu0 0.0
  %1105 = vmatpush1.msra.mxu0 %v938
  %1106 = vmatprep.subr.mxu0 0.0
  %1107 = vmatpush1.msra.mxu0 %v939
  %1108 = vmatprep.subr.mxu0 0.0
  %1109 = vmatpush1.msra.mxu0 %v940
  %1110 = vmatprep.subr.mxu0 0.0
  %1111 = vmatpush1.msra.mxu0 %v941
  %1112 = vmatprep.subr.mxu0 0.0
  %1113 = vmatpush1.msra.mxu0 %v942
  %1114 = vmatprep.subr.mxu0 0.0
  %1115 = vmatpush1.msra.mxu0 %v943
  %1116 = vmatprep.subr.mxu0 0.0
  %1117 = vmatpush1.msra.mxu0 %v944
  %1118 = vmatprep.subr.mxu0 0.0
  %1119 = vmatpush1.msra.mxu0 %v945
  %1120 = vmatprep.subr.mxu0 0.0
  %1121 = vmatpush1.msra.mxu0 %v946
  %1122 = vmatprep.subr.mxu0 0.0
  %1123 = vmatpush1.msra.mxu0 %v947
  %1124 = vmatprep.subr.mxu0 0.0
  %1125 = vmatpush1.msra.mxu0 %v948
  %1126 = vmatprep.subr.mxu0 0.0
  %1127 = vmatpush1.msra.mxu0 %v949
  %1128 = vmatprep.subr.mxu0 0.0
  %1129 = vmatpush1.msra.mxu0 %v950
  %1130 = vmatprep.subr.mxu0 0.0
  %1131 = vmatpush1.msra.mxu0 0.0
  %1132 = vmatprep.subr.mxu0 0.0
  %1133 = vmatpush1.msra.mxu0 0.0
  %1134 = vmatprep.subr.mxu0 0.0
  %1135 = vmatpush1.msra.mxu0 0.0
  %1136 = vmatprep.subr.mxu0 0.0
  %1137 = vmatpush1.msra.mxu0 0.0
  %1138 = vmatprep.subr.mxu0 0.0
  %1139 = vmatpush1.msra.mxu0 0.0
  %1140 = vmatprep.subr.mxu0 0.0
  %1141 = vmatpush1.msra.mxu0 0.0
  %1142 = vmatprep.subr.mxu0 0.0
  %1143 = vmatpush1.msra.mxu0 0.0
  %1144 = vmatprep.subr.mxu0 0.0
  %1145 = vmatpush1.msra.mxu0 0.0
  %1146 = vmatprep.subr.mxu0 0.0
  %1147 = vmatpush1.msra.mxu0 0.0
  %1148 = vmatprep.subr.mxu0 0.0
  %1149 = vmatpush1.msra.mxu0 0.0
  %1150 = vmatprep.subr.mxu0 0.0
  %1151 = vmatpush1.msra.mxu0 0.0
  %1152 = vmatprep.subr.mxu0 0.0
  %1153 = vmatpush1.msra.mxu0 0.0
  %1154 = vmatprep.subr.mxu0 0.0
  %1155 = vmatpush1.msra.mxu0 0.0
  %1156 = vmatprep.subr.mxu0 0.0
  %1157 = vmatpush1.msra.mxu0 0.0
  %1158 = vmatprep.subr.mxu0 0.0
  %1159 = vmatpush1.msra.mxu0 0.0
  %1160 = vmatprep.subr.mxu0 0.0
  %1161 = vmatpush1.msra.mxu0 0.0
  %1162 = vmatprep.mubr.f32.mxu0 0.0
  %1163 = vmatmul.mubr.f32.gmra.mrb[0].mxu0 %v1096
  %v1164 = vpop.f32.mrb[0].mxu0
  %v1165 = vadd.f32 0.0, %v1164
  %v1166 = vpop.f32.mrb[0].mxu0
  %1167 = vdwg.mxu0
  %v1168 = vadd.f32 %v1097, %v1165
  %v1169 = vtanh.pop %v1168
  %v1170 = vld [vmem:[%s416] sm:$0xff]
  %1171 = vmatprep.subr.mxu0 0.0
  %1172 = vmatpush1.msra.mxu0 %v935
  %1173 = vmatprep.subr.mxu0 0.0
  %1174 = vmatpush1.msra.mxu0 %v936
  %1175 = vmatprep.subr.mxu0 0.0
  %1176 = vmatpush1.msra.mxu0 %v937
  %1177 = vmatprep.subr.mxu0 0.0
  %1178 = vmatpush1.msra.mxu0 %v938
  %1179 = vmatprep.subr.mxu0 0.0
  %1180 = vmatpush1.msra.mxu0 %v939
  %1181 = vmatprep.subr.mxu0 0.0
  %1182 = vmatpush1.msra.mxu0 %v940
  %1183 = vmatprep.subr.mxu0 0.0
  %1184 = vmatpush1.msra.mxu0 %v941
  %1185 = vmatprep.subr.mxu0 0.0
  %1186 = vmatpush1.msra.mxu0 %v942
  %1187 = vmatprep.subr.mxu0 0.0
  %1188 = vmatpush1.msra.mxu0 %v943
  %1189 = vmatprep.subr.mxu0 0.0
  %1190 = vmatpush1.msra.mxu0 %v944
  %1191 = vmatprep.subr.mxu0 0.0
  %1192 = vmatpush1.msra.mxu0 %v945
  %1193 = vmatprep.subr.mxu0 0.0
  %1194 = vmatpush1.msra.mxu0 %v946
  %1195 = vmatprep.subr.mxu0 0.0
  %1196 = vmatpush1.msra.mxu0 %v947
  %1197 = vmatprep.subr.mxu0 0.0
  %1198 = vmatpush1.msra.mxu0 %v948
  %1199 = vmatprep.subr.mxu0 0.0
  %1200 = vmatpush1.msra.mxu0 %v949
  %1201 = vmatprep.subr.mxu0 0.0
  %1202 = vmatpush1.msra.mxu0 %v950
  %1203 = vmatprep.subr.mxu0 0.0
  %1204 = vmatpush1.msra.mxu0 0.0
  %1205 = vmatprep.subr.mxu0 0.0
  %1206 = vmatpush1.msra.mxu0 0.0
  %1207 = vmatprep.subr.mxu0 0.0
  %1208 = vmatpush1.msra.mxu0 0.0
  %1209 = vmatprep.subr.mxu0 0.0
  %1210 = vmatpush1.msra.mxu0 0.0
  %1211 = vmatprep.subr.mxu0 0.0
  %1212 = vmatpush1.msra.mxu0 0.0
  %1213 = vmatprep.subr.mxu0 0.0
  %1214 = vmatpush1.msra.mxu0 0.0
  %1215 = vmatprep.subr.mxu0 0.0
  %1216 = vmatpush1.msra.mxu0 0.0
  %1217 = vmatprep.subr.mxu0 0.0
  %1218 = vmatpush1.msra.mxu0 0.0
  %1219 = vmatprep.subr.mxu0 0.0
  %1220 = vmatpush1.msra.mxu0 0.0
  %1221 = vmatprep.subr.mxu0 0.0
  %1222 = vmatpush1.msra.mxu0 0.0
  %1223 = vmatprep.subr.mxu0 0.0
  %1224 = vmatpush1.msra.mxu0 0.0
  %1225 = vmatprep.subr.mxu0 0.0
  %1226 = vmatpush1.msra.mxu0 0.0
  %1227 = vmatprep.subr.mxu0 0.0
  %1228 = vmatpush1.msra.mxu0 0.0
  %1229 = vmatprep.subr.mxu0 0.0
  %1230 = vmatpush1.msra.mxu0 0.0
  %1231 = vmatprep.subr.mxu0 0.0
  %1232 = vmatpush1.msra.mxu0 0.0
  %1233 = vmatprep.subr.mxu0 0.0
  %1234 = vmatpush1.msra.mxu0 0.0
  %1235 = vmatprep.mubr.f32.mxu0 0.0
  %1236 = vmatmul.mubr.f32.gmra.mrb[0].mxu0 %v1169
  %v1237 = vpop.f32.mrb[0].mxu0
  %v1238 = vadd.f32 0.0, %v1237
  %v1239 = vpop.f32.mrb[0].mxu0
  %1240 = vdwg.mxu0
  %v1241 = vadd.f32 %v1170, %v1238
  %v1242 = vtanh.pop %v1241
  %v1243 = vld [vmem:[%s491] sm:$0xff]
  %1244 = vmatprep.subr.mxu0 0.0
  %1245 = vmatpush1.msra.mxu0 %v935
  %1246 = vmatprep.subr.mxu0 0.0
  %1247 = vmatpush1.msra.mxu0 %v936
  %1248 = vmatprep.subr.mxu0 0.0
  %1249 = vmatpush1.msra.mxu0 %v937
  %1250 = vmatprep.subr.mxu0 0.0
  %1251 = vmatpush1.msra.mxu0 %v938
  %1252 = vmatprep.subr.mxu0 0.0
  %1253 = vmatpush1.msra.mxu0 %v939
  %1254 = vmatprep.subr.mxu0 0.0
  %1255 = vmatpush1.msra.mxu0 %v940
  %1256 = vmatprep.subr.mxu0 0.0
  %1257 = vmatpush1.msra.mxu0 %v941
  %1258 = vmatprep.subr.mxu0 0.0
  %1259 = vmatpush1.msra.mxu0 %v942
  %1260 = vmatprep.subr.mxu0 0.0
  %1261 = vmatpush1.msra.mxu0 %v943
  %1262 = vmatprep.subr.mxu0 0.0
  %1263 = vmatpush1.msra.mxu0 %v944
  %1264 = vmatprep.subr.mxu0 0.0
  %1265 = vmatpush1.msra.mxu0 %v945
  %1266 = vmatprep.subr.mxu0 0.0
  %1267 = vmatpush1.msra.mxu0 %v946
  %1268 = vmatprep.subr.mxu0 0.0
  %1269 = vmatpush1.msra.mxu0 %v947
  %1270 = vmatprep.subr.mxu0 0.0
  %1271 = vmatpush1.msra.mxu0 %v948
  %1272 = vmatprep.subr.mxu0 0.0
  %1273 = vmatpush1.msra.mxu0 %v949
  %1274 = vmatprep.subr.mxu0 0.0
  %1275 = vmatpush1.msra.mxu0 %v950
  %1276 = vmatprep.subr.mxu0 0.0
  %1277 = vmatpush1.msra.mxu0 0.0
  %1278 = vmatprep.subr.mxu0 0.0
  %1279 = vmatpush1.msra.mxu0 0.0
  %1280 = vmatprep.subr.mxu0 0.0
  %1281 = vmatpush1.msra.mxu0 0.0
  %1282 = vmatprep.subr.mxu0 0.0
  %1283 = vmatpush1.msra.mxu0 0.0
  %1284 = vmatprep.subr.mxu0 0.0
  %1285 = vmatpush1.msra.mxu0 0.0
  %1286 = vmatprep.subr.mxu0 0.0
  %1287 = vmatpush1.msra.mxu0 0.0
  %1288 = vmatprep.subr.mxu0 0.0
  %1289 = vmatpush1.msra.mxu0 0.0
  %1290 = vmatprep.subr.mxu0 0.0
  %1291 = vmatpush1.msra.mxu0 0.0
  %1292 = vmatprep.subr.mxu0 0.0
  %1293 = vmatpush1.msra.mxu0 0.0
  %1294 = vmatprep.subr.mxu0 0.0
  %1295 = vmatpush1.msra.mxu0 0.0
  %1296 = vmatprep.subr.mxu0 0.0
  %1297 = vmatpush1.msra.mxu0 0.0
  %1298 = vmatprep.subr.mxu0 0.0
  %1299 = vmatpush1.msra.mxu0 0.0
  %1300 = vmatprep.subr.mxu0 0.0
  %1301 = vmatpush1.msra.mxu0 0.0
  %1302 = vmatprep.subr.mxu0 0.0
  %1303 = vmatpush1.msra.mxu0 0.0
  %1304 = vmatprep.subr.mxu0 0.0
  %1305 = vmatpush1.msra.mxu0 0.0
  %1306 = vmatprep.subr.mxu0 0.0
  %1307 = vmatpush1.msra.mxu0 0.0
  %1308 = vmatprep.mubr.f32.mxu0 0.0
  %1309 = vmatmul.mubr.f32.gmra.mrb[0].mxu0 %v1242
  %v1310 = vpop.f32.mrb[0].mxu0
  %v1311 = vadd.f32 0.0, %v1310
  %v1312 = vpop.f32.mrb[0].mxu0
  %1313 = vdwg.mxu0
  %v1314 = vadd.f32 %v1243, %v1311
  %v1315 = vtanh.pop %v1314
  %v1316 = vld [vmem:[%s566] sm:$0xff]
  %1317 = vmatprep.subr.mxu0 0.0
  %1318 = vmatpush1.msra.mxu0 %v935
  %1319 = vmatprep.subr.mxu0 0.0
  %1320 = vmatpush1.msra.mxu0 %v936
  %1321 = vmatprep.subr.mxu0 0.0
  %1322 = vmatpush1.msra.mxu0 %v937
  %1323 = vmatprep.subr.mxu0 0.0
  %1324 = vmatpush1.msra.mxu0 %v938
  %1325 = vmatprep.subr.mxu0 0.0
  %1326 = vmatpush1.msra.mxu0 %v939
  %1327 = vmatprep.subr.mxu0 0.0
  %1328 = vmatpush1.msra.mxu0 %v940
  %1329 = vmatprep.subr.mxu0 0.0
  %1330 = vmatpush1.msra.mxu0 %v941
  %1331 = vmatprep.subr.mxu0 0.0
  %1332 = vmatpush1.msra.mxu0 %v942
  %1333 = vmatprep.subr.mxu0 0.0
  %1334 = vmatpush1.msra.mxu0 %v943
  %1335 = vmatprep.subr.mxu0 0.0
  %1336 = vmatpush1.msra.mxu0 %v944
  %1337 = vmatprep.subr.mxu0 0.0
  %1338 = vmatpush1.msra.mxu0 %v945
  %1339 = vmatprep.subr.mxu0 0.0
  %1340 = vmatpush1.msra.mxu0 %v946
  %1341 = vmatprep.subr.mxu0 0.0
  %1342 = vmatpush1.msra.mxu0 %v947
  %1343 = vmatprep.subr.mxu0 0.0
  %1344 = vmatpush1.msra.mxu0 %v948
  %1345 = vmatprep.subr.mxu0 0.0
  %1346 = vmatpush1.msra.mxu0 %v949
  %1347 = vmatprep.subr.mxu0 0.0
  %1348 = vmatpush1.msra.mxu0 %v950
  %1349 = vmatprep.subr.mxu0 0.0
  %1350 = vmatpush1.msra.mxu0 0.0
  %1351 = vmatprep.subr.mxu0 0.0
  %1352 = vmatpush1.msra.mxu0 0.0
  %1353 = vmatprep.subr.mxu0 0.0
  %1354 = vmatpush1.msra.mxu0 0.0
  %1355 = vmatprep.subr.mxu0 0.0
  %1356 = vmatpush1.msra.mxu0 0.0
  %1357 = vmatprep.subr.mxu0 0.0
  %1358 = vmatpush1.msra.mxu0 0.0
  %1359 = vmatprep.subr.mxu0 0.0
  %1360 = vmatpush1.msra.mxu0 0.0
  %1361 = vmatprep.subr.mxu0 0.0
  %1362 = vmatpush1.msra.mxu0 0.0
  %1363 = vmatprep.subr.mxu0 0.0
  %1364 = vmatpush1.msra.mxu0 0.0
  %1365 = vmatprep.subr.mxu0 0.0
  %1366 = vmatpush1.msra.mxu0 0.0
  %1367 = vmatprep.subr.mxu0 0.0
  %1368 = vmatpush1.msra.mxu0 0.0
  %1369 = vmatprep.subr.mxu0 0.0
  %1370 = vmatpush1.msra.mxu0 0.0
  %1371 = vmatprep.subr.mxu0 0.0
  %1372 = vmatpush1.msra.mxu0 0.0
  %1373 = vmatprep.subr.mxu0 0.0
  %1374 = vmatpush1.msra.mxu0 0.0
  %1375 = vmatprep.subr.mxu0 0.0
  %1376 = vmatpush1.msra.mxu0 0.0
  %1377 = vmatprep.subr.mxu0 0.0
  %1378 = vmatpush1.msra.mxu0 0.0
  %1379 = vmatprep.subr.mxu0 0.0
  %1380 = vmatpush1.msra.mxu0 0.0
  %1381 = vmatprep.mubr.f32.mxu0 0.0
  %1382 = vmatmul.mubr.f32.gmra.mrb[0].mxu0 %v1315
  %v1383 = vpop.f32.mrb[0].mxu0
  %v1384 = vadd.f32 0.0, %v1383
  %v1385 = vpop.f32.mrb[0].mxu0
  %1386 = vdwg.mxu0
  %v1387 = vadd.f32 %v1316, %v1384
  %v1388 = vtanh.pop %v1387
  %v1389 = vld [vmem:[%s641] sm:$0xff]
  %1390 = vmatprep.subr.mxu0 0.0
  %1391 = vmatpush1.msra.mxu0 %v935
  %1392 = vmatprep.subr.mxu0 0.0
  %1393 = vmatpush1.msra.mxu0 %v936
  %1394 = vmatprep.subr.mxu0 0.0
  %1395 = vmatpush1.msra.mxu0 %v937
  %1396 = vmatprep.subr.mxu0 0.0
  %1397 = vmatpush1.msra.mxu0 %v938
  %1398 = vmatprep.subr.mxu0 0.0
  %1399 = vmatpush1.msra.mxu0 %v939
  %1400 = vmatprep.subr.mxu0 0.0
  %1401 = vmatpush1.msra.mxu0 %v940
  %1402 = vmatprep.subr.mxu0 0.0
  %1403 = vmatpush1.msra.mxu0 %v941
  %1404 = vmatprep.subr.mxu0 0.0
  %1405 = vmatpush1.msra.mxu0 %v942
  %1406 = vmatprep.subr.mxu0 0.0
  %1407 = vmatpush1.msra.mxu0 %v943
  %1408 = vmatprep.subr.mxu0 0.0
  %1409 = vmatpush1.msra.mxu0 %v944
  %1410 = vmatprep.subr.mxu0 0.0
  %1411 = vmatpush1.msra.mxu0 %v945
  %1412 = vmatprep.subr.mxu0 0.0
  %1413 = vmatpush1.msra.mxu0 %v946
  %1414 = vmatprep.subr.mxu0 0.0
  %1415 = vmatpush1.msra.mxu0 %v947
  %1416 = vmatprep.subr.mxu0 0.0
  %1417 = vmatpush1.msra.mxu0 %v948
  %1418 = vmatprep.subr.mxu0 0.0
  %1419 = vmatpush1.msra.mxu0 %v949
  %1420 = vmatprep.subr.mxu0 0.0
  %1421 = vmatpush1.msra.mxu0 %v950
  %1422 = vmatprep.subr.mxu0 0.0
  %1423 = vmatpush1.msra.mxu0 0.0
  %1424 = vmatprep.subr.mxu0 0.0
  %1425 = vmatpush1.msra.mxu0 0.0
  %1426 = vmatprep.subr.mxu0 0.0
  %1427 = vmatpush1.msra.mxu0 0.0
  %1428 = vmatprep.subr.mxu0 0.0
  %1429 = vmatpush1.msra.mxu0 0.0
  %1430 = vmatprep.subr.mxu0 0.0
  %1431 = vmatpush1.msra.mxu0 0.0
  %1432 = vmatprep.subr.mxu0 0.0
  %1433 = vmatpush1.msra.mxu0 0.0
  %1434 = vmatprep.subr.mxu0 0.0
  %1435 = vmatpush1.msra.mxu0 0.0
  %1436 = vmatprep.subr.mxu0 0.0
  %1437 = vmatpush1.msra.mxu0 0.0
  %1438 = vmatprep.subr.mxu0 0.0
  %1439 = vmatpush1.msra.mxu0 0.0
  %1440 = vmatprep.subr.mxu0 0.0
  %1441 = vmatpush1.msra.mxu0 0.0
  %1442 = vmatprep.subr.mxu0 0.0
  %1443 = vmatpush1.msra.mxu0 0.0
  %1444 = vmatprep.subr.mxu0 0.0
  %1445 = vmatpush1.msra.mxu0 0.0
  %1446 = vmatprep.subr.mxu0 0.0
  %1447 = vmatpush1.msra.mxu0 0.0
  %1448 = vmatprep.subr.mxu0 0.0
  %1449 = vmatpush1.msra.mxu0 0.0
  %1450 = vmatprep.subr.mxu0 0.0
  %1451 = vmatpush1.msra.mxu0 0.0
  %1452 = vmatprep.subr.mxu0 0.0
  %1453 = vmatpush1.msra.mxu0 0.0
  %1454 = vmatprep.mubr.f32.mxu0 0.0
  %1455 = vmatmul.mubr.f32.gmra.mrb[0].mxu0 %v1388
  %v1456 = vpop.f32.mrb[0].mxu0
  %v1457 = vadd.f32 0.0, %v1456
  %v1458 = vpop.f32.mrb[0].mxu0
  %1459 = vdwg.mxu0
  %v1460 = vadd.f32 %v1389, %v1457
  %v1461 = vtanh.pop %v1460
  %v1462 = vld [vmem:[%s716] sm:$0xff]
  %1463 = vmatprep.subr.mxu0 0.0
  %1464 = vmatpush1.msra.mxu0 %v935
  %1465 = vmatprep.subr.mxu0 0.0
  %1466 = vmatpush1.msra.mxu0 %v936
  %1467 = vmatprep.subr.mxu0 0.0
  %1468 = vmatpush1.msra.mxu0 %v937
  %1469 = vmatprep.subr.mxu0 0.0
  %1470 = vmatpush1.msra.mxu0 %v938
  %1471 = vmatprep.subr.mxu0 0.0
  %1472 = vmatpush1.msra.mxu0 %v939
  %1473 = vmatprep.subr.mxu0 0.0
  %1474 = vmatpush1.msra.mxu0 %v940
  %1475 = vmatprep.subr.mxu0 0.0
  %1476 = vmatpush1.msra.mxu0 %v941
  %1477 = vmatprep.subr.mxu0 0.0
  %1478 = vmatpush1.msra.mxu0 %v942
  %1479 = vmatprep.subr.mxu0 0.0
  %1480 = vmatpush1.msra.mxu0 %v943
  %1481 = vmatprep.subr.mxu0 0.0
  %1482 = vmatpush1.msra.mxu0 %v944
  %1483 = vmatprep.subr.mxu0 0.0
  %1484 = vmatpush1.msra.mxu0 %v945
  %1485 = vmatprep.subr.mxu0 0.0
  %1486 = vmatpush1.msra.mxu0 %v946
  %1487 = vmatprep.subr.mxu0 0.0
  %1488 = vmatpush1.msra.mxu0 %v947
  %1489 = vmatprep.subr.mxu0 0.0
  %1490 = vmatpush1.msra.mxu0 %v948
  %1491 = vmatprep.subr.mxu0 0.0
  %1492 = vmatpush1.msra.mxu0 %v949
  %1493 = vmatprep.subr.mxu0 0.0
  %1494 = vmatpush1.msra.mxu0 %v950
  %1495 = vmatprep.subr.mxu0 0.0
  %1496 = vmatpush1.msra.mxu0 0.0
  %1497 = vmatprep.subr.mxu0 0.0
  %1498 = vmatpush1.msra.mxu0 0.0
  %1499 = vmatprep.subr.mxu0 0.0
  %1500 = vmatpush1.msra.mxu0 0.0
  %1501 = vmatprep.subr.mxu0 0.0
  %1502 = vmatpush1.msra.mxu0 0.0
  %1503 = vmatprep.subr.mxu0 0.0
  %1504 = vmatpush1.msra.mxu0 0.0
  %1505 = vmatprep.subr.mxu0 0.0
  %1506 = vmatpush1.msra.mxu0 0.0
  %1507 = vmatprep.subr.mxu0 0.0
  %1508 = vmatpush1.msra.mxu0 0.0
  %1509 = vmatprep.subr.mxu0 0.0
  %1510 = vmatpush1.msra.mxu0 0.0
  %1511 = vmatprep.subr.mxu0 0.0
  %1512 = vmatpush1.msra.mxu0 0.0
  %1513 = vmatprep.subr.mxu0 0.0
  %1514 = vmatpush1.msra.mxu0 0.0
  %1515 = vmatprep.subr.mxu0 0.0
  %1516 = vmatpush1.msra.mxu0 0.0
  %1517 = vmatprep.subr.mxu0 0.0
  %1518 = vmatpush1.msra.mxu0 0.0
  %1519 = vmatprep.subr.mxu0 0.0
  %1520 = vmatpush1.msra.mxu0 0.0
  %1521 = vmatprep.subr.mxu0 0.0
  %1522 = vmatpush1.msra.mxu0 0.0
  %1523 = vmatprep.subr.mxu0 0.0
  %1524 = vmatpush1.msra.mxu0 0.0
  %1525 = vmatprep.subr.mxu0 0.0
  %1526 = vmatpush1.msra.mxu0 0.0
  %1527 = vmatprep.mubr.f32.mxu0 0.0
  %1528 = vmatmul.mubr.f32.gmra.mrb[0].mxu0 %v1461
  %v1529 = vpop.f32.mrb[0].mxu0
  %v1530 = vadd.f32 0.0, %v1529
  %v1531 = vpop.f32.mrb[0].mxu0
  %1532 = vdwg.mxu0
  %v1533 = vadd.f32 %v1462, %v1530
  %v1534 = vtanh.pop %v1533
  %v1535 = vld [vmem:[%s7] sm:$0xff]
  %v1536 = vld [vmem:[%s7 + $0x8] sm:$0xff]
  %v1537 = vld [vmem:[%s7 + $0x10] sm:$0xff]
  %v1538 = vld [vmem:[%s7 + $0x18] sm:$0xff]
  %v1539 = vld [vmem:[%s7 + $0x20] sm:$0xff]
  %v1540 = vld [vmem:[%s7 + $0x28] sm:$0xff]
  %v1541 = vld [vmem:[%s7 + $0x30] sm:$0xff]
  %v1542 = vld [vmem:[%s7 + $0x38] sm:$0xff]
  %v1543 = vld [vmem:[%s7 + $0x40] sm:$0xff]
  %v1544 = vld [vmem:[%s7 + $0x48] sm:$0xff]
  %v1545 = vld [vmem:[%s7 + $0x50] sm:$0xff]
  %v1546 = vld [vmem:[%s7 + $0x58] sm:$0xff]
  %v1547 = vld [vmem:[%s7 + $0x60] sm:$0xff]
  %v1548 = vld [vmem:[%s7 + $0x68] sm:$0xff]
  %v1549 = vld [vmem:[%s7 + $0x70] sm:$0xff]
  %v1550 = vld [vmem:[%s7 + $0x78] sm:$0xff]
  %v1551 = vld [vmem:[%s8] sm:$0x1]
  %v1553 = vlaneseq
  %v1554 = vshrl.u32 %v1553, 7
  %v1555 = vsub.s32 0, %v1554
  %v1556 = vrot.slane %v1551, %v1555
  %1558 = vmatprep.subr.mxu0 0.0
  %1559 = vmatpush1.msra.mxu0 %v1535
  %1560 = vmatprep.subr.mxu0 0.0
  %1561 = vmatpush1.msra.mxu0 %v1536
  %1562 = vmatprep.subr.mxu0 0.0
  %1563 = vmatpush1.msra.mxu0 %v1537
  %1564 = vmatprep.subr.mxu0 0.0
  %1565 = vmatpush1.msra.mxu0 %v1538
  %1566 = vmatprep.subr.mxu0 0.0
  %1567 = vmatpush1.msra.mxu0 %v1539
  %1568 = vmatprep.subr.mxu0 0.0
  %1569 = vmatpush1.msra.mxu0 %v1540
  %1570 = vmatprep.subr.mxu0 0.0
  %1571 = vmatpush1.msra.mxu0 %v1541
  %1572 = vmatprep.subr.mxu0 0.0
  %1573 = vmatpush1.msra.mxu0 %v1542
  %1574 = vmatprep.subr.mxu0 0.0
  %1575 = vmatpush1.msra.mxu0 %v1543
  %1576 = vmatprep.subr.mxu0 0.0
  %1577 = vmatpush1.msra.mxu0 %v1544
  %1578 = vmatprep.subr.mxu0 0.0
  %1579 = vmatpush1.msra.mxu0 %v1545
  %1580 = vmatprep.subr.mxu0 0.0
  %1581 = vmatpush1.msra.mxu0 %v1546
  %1582 = vmatprep.subr.mxu0 0.0
  %1583 = vmatpush1.msra.mxu0 %v1547
  %1584 = vmatprep.subr.mxu0 0.0
  %1585 = vmatpush1.msra.mxu0 %v1548
  %1586 = vmatprep.subr.mxu0 0.0
  %1587 = vmatpush1.msra.mxu0 %v1549
  %1588 = vmatprep.subr.mxu0 0.0
  %1589 = vmatpush1.msra.mxu0 %v1550
  %1590 = vmatprep.subr.mxu0 0.0
  %1591 = vmatpush1.msra.mxu0 0.0
  %1592 = vmatprep.subr.mxu0 0.0
  %1593 = vmatpush1.msra.mxu0 0.0
  %1594 = vmatprep.subr.mxu0 0.0
  %1595 = vmatpush1.msra.mxu0 0.0
  %1596 = vmatprep.subr.mxu0 0.0
  %1597 = vmatpush1.msra.mxu0 0.0
  %1598 = vmatprep.subr.mxu0 0.0
  %1599 = vmatpush1.msra.mxu0 0.0
  %1600 = vmatprep.subr.mxu0 0.0
  %1601 = vmatpush1.msra.mxu0 0.0
  %1602 = vmatprep.subr.mxu0 0.0
  %1603 = vmatpush1.msra.mxu0 0.0
  %1604 = vmatprep.subr.mxu0 0.0
  %1605 = vmatpush1.msra.mxu0 0.0
  %1606 = vmatprep.subr.mxu0 0.0
  %1607 = vmatpush1.msra.mxu0 0.0
  %1608 = vmatprep.subr.mxu0 0.0
  %1609 = vmatpush1.msra.mxu0 0.0
  %1610 = vmatprep.subr.mxu0 0.0
  %1611 = vmatpush1.msra.mxu0 0.0
  %1612 = vmatprep.subr.mxu0 0.0
  %1613 = vmatpush1.msra.mxu0 0.0
  %1614 = vmatprep.subr.mxu0 0.0
  %1615 = vmatpush1.msra.mxu0 0.0
  %1616 = vmatprep.subr.mxu0 0.0
  %1617 = vmatpush1.msra.mxu0 0.0
  %1618 = vmatprep.subr.mxu0 0.0
  %1619 = vmatpush1.msra.mxu0 0.0
  %1620 = vmatprep.subr.mxu0 0.0
  %1621 = vmatpush1.msra.mxu0 0.0
  %1622 = vmatprep.mubr.f32.mxu0 0.0
  %1623 = vmatmul.mubr.f32.gmra.mrb[0].mxu0 %v1534
  %v1624 = vpop.f32.mrb[0].mxu0
  %v1625 = vadd.f32 %v1556, %v1624
  %v1626 = vpop.f32.mrb[0].mxu0
  %1627 = vdwg.mxu0
  %1628 = vst [vmem:[%s9] sm:$0xff] %v1625
  // Predicated region
  $region38: #{rnn_classifier_forward.1} parent=0 // pred_check
    _
  $region39: #{rnn_classifier_forward.1} parent=0 // pred_check_branch
    %1630 = sbr.rel (0) target = $region41
  $region40: #{rnn_classifier_forward.1} parent=0 // pred_region
    _
  $region41: #{rnn_classifier_forward.1} parent=0 // pred_fallthru
    _
  // Predicated region
  $region42: #{rnn_classifier_forward.1} parent=0 // pred_check
    _
  $region43: #{rnn_classifier_forward.1} parent=0 // pred_check_branch
    %1632 = sbr.rel (0) target = $region45
  $region44: #{rnn_classifier_forward.1} parent=0 // pred_region
    _
  $region45: #{rnn_classifier_forward.1} parent=0 // pred_fallthru
    _

</llo_original>
